<compile_context>
chip_gen: v5e
topology: v5e:2x2
jax: 0.10.0
libtpu: 0.0.40
codegen_flags: <defaults>
</compile_context>

<pallas_src>
import functools

import jax
import jax.numpy as jnp
from jax.experimental import pallas as pl
from jax.experimental.pallas import tpu as pltpu

BN_EPS = 1e-5


# --------------------------------------------------------------------------
# Fused kernel: 4 phases over the same M-tile axis, activations VMEM-resident.
# --------------------------------------------------------------------------
def _fused_kernel(alpha_ref, x_ref, gb0_ref, w1_ref, b1_ref, gb1_ref,
                  w2_ref, b2_ref, gb2_ref, w3_ref, b3_ref,
                  out_ref,
                  xs, h1s, h2s, st0, st1, st2,
                  *, inv_count):
    ph = pl.program_id(0)   # phase
    i = pl.program_id(1)    # row tile

    def accum(st_ref, v):
        # v: (tm, d) f32 tile; accumulate per-feature sum / sum-of-squares.
        st_ref[0:1, :] += jnp.sum(v, axis=0, keepdims=True)
        st_ref[1:2, :] += jnp.sum(v * v, axis=0, keepdims=True)

    def finalize(st_ref, gb_ref):
        # (sum, sumsq) -> in-place (scale, shift) of the folded BN affine.
        # Variance via E[x^2]-mean^2, clamped >= 0 (cancellation guard).
        mean = st_ref[0:1, :] * inv_count
        var = jnp.maximum(st_ref[1:2, :] * inv_count - mean * mean, 0.0)
        inv = jax.lax.rsqrt(var + BN_EPS)
        scale = gb_ref[0:1, :] * inv
        shift = gb_ref[1:2, :] - mean * scale
        st_ref[0:1, :] = scale
        st_ref[1:2, :] = shift

    def bn_matmul(src_ref, st_ref, w_ref, b_ref):
        # BN affine (f32) -> bf16 MXU matmul with f32 accumulate -> +bias.
        h = src_ref[i].astype(jnp.float32)
        hn = h * st_ref[0:1, :] + st_ref[1:2, :]
        return jnp.dot(hn.astype(jnp.bfloat16), w_ref[...],
                       preferred_element_type=jnp.float32) + b_ref[...]

    @pl.when(ph == 0)           # bn0 statistics of x; park x in VMEM (bf16)
    def _():
        @pl.when(i == 0)
        def _():
            st0[...] = jnp.zeros_like(st0)
        xt = x_ref[...]
        accum(st0, xt)
        xs[i] = xt.astype(jnp.bfloat16)

    @pl.when(ph == 1)           # bn0 -> fc1 -> PReLU ; bn1 statistics
    def _():
        @pl.when(i == 0)
        def _():
            finalize(st0, gb0_ref)
            st1[...] = jnp.zeros_like(st1)
        y = bn_matmul(xs, st0, w1_ref, b1_ref)
        y = jnp.where(y >= 0.0, y, alpha_ref[0] * y)
        accum(st1, y)
        h1s[i] = y.astype(jnp.bfloat16)

    @pl.when(ph == 2)           # bn1 -> fc2 -> PReLU ; bn2 statistics
    def _():
        @pl.when(i == 0)
        def _():
            finalize(st1, gb1_ref)
            st2[...] = jnp.zeros_like(st2)
        y = bn_matmul(h1s, st1, w2_ref, b2_ref)
        y = jnp.where(y >= 0.0, y, alpha_ref[1] * y)
        accum(st2, y)
        h2s[i] = y.astype(jnp.bfloat16)

    @pl.when(ph == 3)           # bn2 -> fc3 -> tanh ; the only HBM write
    def _():
        @pl.when(i == 0)
        def _():
            finalize(st2, gb2_ref)
        y = bn_matmul(h2s, st2, w3_ref, b3_ref)
        out_ref[...] = jnp.tanh(y)


# --------------------------------------------------------------------------
# Wrapper.
# --------------------------------------------------------------------------
def _pick_block_rows(m):
    for t in (8192, 4096, 2048, 1024, 512, 256, 128, 64, 32, 16):
        if m % t == 0:
            return t
    return m


def _lane_pad(d):
    return ((d + 127) // 128) * 128


@functools.partial(jax.jit, static_argnames=("block_rows",))
def meta_dense_forward(x, params, block_rows=None):
    """metaDense forward (training-mode BatchNorm1d batch statistics).

    x: (B, input_dim) float32.  params use PyTorch layouts (Linear weight is
    (out_features, in_features))."""
    x = x.astype(jnp.float32)
    m, d0 = x.shape
    d1 = params["fc1_w"].shape[0]
    d2 = params["fc2_w"].shape[0]
    d3 = params["fc3_w"].shape[0]

    tm = _pick_block_rows(m) if block_rows is None else block_rows
    assert m % tm == 0, "batch must be divisible by the row tile"
    n_tiles = m // tm

    # VMEM budget: bf16-resident activations + double-buffered x/out tiles
    # + bf16 weights (lane-padded to 128).
    resident = m * (_lane_pad(d0) + _lane_pad(d1) + _lane_pad(d2)) * 2
    io_tiles = 2 * tm * (_lane_pad(d0) + _lane_pad(d3)) * 4
    weights = (d0 * _lane_pad(d1) + d1 * _lane_pad(d2) + d2 * _lane_pad(d3)) * 2
    need = resident + io_tiles + weights + 64 * 1024
    assert resident < 40 * 2 ** 20, (
        "batch too large for the VMEM-resident fused kernel (needs the "
        "streaming variant)")
    vmem_limit = int(min(112 * 2 ** 20, max(32 * 2 ** 20, 2 * need)))

    # Weights: transpose once to (in, out), cast once to bf16 for the MXU.
    w1 = jnp.transpose(params["fc1_w"]).astype(jnp.bfloat16)
    w2 = jnp.transpose(params["fc2_w"]).astype(jnp.bfloat16)
    w3 = jnp.transpose(params["fc3_w"]).astype(jnp.bfloat16)
    b1 = params["fc1_b"].reshape(1, -1).astype(jnp.float32)
    b2 = params["fc2_b"].reshape(1, -1).astype(jnp.float32)
    b3 = params["fc3_b"].reshape(1, -1).astype(jnp.float32)
    gb0 = jnp.stack([params["bn0_gamma"], params["bn0_beta"]]).astype(jnp.float32)
    gb1 = jnp.stack([params["bn1_gamma"], params["bn1_beta"]]).astype(jnp.float32)
    gb2 = jnp.stack([params["bn2_gamma"], params["bn2_beta"]]).astype(jnp.float32)
    alphas = jnp.concatenate([params["prelu1"].reshape(1),
                              params["prelu2"].reshape(1)]).astype(jnp.float32)

    cost = pl.CostEstimate(
        flops=2 * m * (d0 * d1 + d1 * d2 + d2 * d3),
        transcendentals=m * d3,
        bytes_accessed=4 * m * d0 + 4 * m * d3
        + 2 * (d0 * d1 + d1 * d2 + d2 * d3),
    )

    kernel = functools.partial(_fused_kernel, inv_count=1.0 / m)

    return pl.pallas_call(
        kernel,
        out_shape=jax.ShapeDtypeStruct((m, d3), jnp.float32),
        grid=(4, n_tiles),
        in_specs=[
            pl.BlockSpec(memory_space=pltpu.MemorySpace.SMEM),          # alphas
            # x only needs to stream during phase 0 (it is parked in VMEM).
            pl.BlockSpec((tm, d0),
                         lambda ph, i: (jnp.where(ph == 0, i, 0), 0)),  # x
            pl.BlockSpec((2, d0), lambda ph, i: (0, 0)),                # gb0
            pl.BlockSpec((d0, d1), lambda ph, i: (0, 0)),               # w1
            pl.BlockSpec((1, d1), lambda ph, i: (0, 0)),                # b1
            pl.BlockSpec((2, d1), lambda ph, i: (0, 0)),                # gb1
            pl.BlockSpec((d1, d2), lambda ph, i: (0, 0)),               # w2
            pl.BlockSpec((1, d2), lambda ph, i: (0, 0)),                # b2
            pl.BlockSpec((2, d2), lambda ph, i: (0, 0)),                # gb2
            pl.BlockSpec((d2, d3), lambda ph, i: (0, 0)),               # w3
            pl.BlockSpec((1, d3), lambda ph, i: (0, 0)),                # b3
        ],
        # Output blocks only advance in phase 3 -> no garbage write-backs.
        out_specs=pl.BlockSpec((tm, d3),
                               lambda ph, i: (jnp.where(ph == 3, i, 0), 0)),
        scratch_shapes=[
            pltpu.VMEM((n_tiles, tm, d0), jnp.bfloat16),   # resident x
            pltpu.VMEM((n_tiles, tm, d1), jnp.bfloat16),   # resident h1
            pltpu.VMEM((n_tiles, tm, d2), jnp.bfloat16),   # resident h2
            pltpu.VMEM((2, d0), jnp.float32),              # bn0 stats -> affine
            pltpu.VMEM((2, d1), jnp.float32),              # bn1 stats -> affine
            pltpu.VMEM((2, d2), jnp.float32),              # bn2 stats -> affine
        ],
        compiler_params=pltpu.CompilerParams(
            dimension_semantics=("arbitrary", "arbitrary"),
            vmem_limit_bytes=vmem_limit),
        cost_estimate=cost,
    )(alphas, x, gb0, w1, b1, gb1, w2, b2, gb2, w3, b3)


# --------------------------------------------------------------------------
# References.
# --------------------------------------------------------------------------
def _reference_forward(x, params):
    """Full-f32, PyTorch-equivalent forward (training-mode BN)."""
    def bn(y, gamma, beta):
        mean = jnp.mean(y, axis=0, keepdims=True)
        var = jnp.mean((y - mean) ** 2, axis=0, keepdims=True)
        return (y - mean) * jax.lax.rsqrt(var + BN_EPS) * gamma.reshape(1, -1) \
            + beta.reshape(1, -1)

    def lin(y, w, b):
        return y @ jnp.transpose(w) + b.reshape(1, -1)

    def prelu(y, a):
        return jnp.where(y >= 0.0, y, a * y)

    h = bn(x, params["bn0_gamma"], params["bn0_beta"])
    h = prelu(lin(h, params["fc1_w"], params["fc1_b"]), params["prelu1"][0])
    h = bn(h, params["bn1_gamma"], params["bn1_beta"])
    h = prelu(lin(h, params["fc2_w"], params["fc2_b"]), params["prelu2"][0])
    h = bn(h, params["bn2_gamma"], params["bn2_beta"])
    return jnp.tanh(lin(h, params["fc3_w"], params["fc3_b"]))


def _matched_reference(x, params):
    """Mirrors the kernel's rounding points (bf16-resident activations, bf16
    MXU operands, f32 stats/accumulation) for a tight numeric check."""
    def prelu(y, a):
        return jnp.where(y >= 0.0, y, a * y)

    def layer(h_f32, gamma, beta, w, b):
        mean = jnp.mean(h_f32, axis=0, keepdims=True)
        var = jnp.maximum(
            jnp.mean(h_f32 * h_f32, axis=0, keepdims=True) - mean * mean, 0.0)
        inv = jax.lax.rsqrt(var + BN_EPS)
        scale = gamma.reshape(1, -1) * inv
        shift = beta.reshape(1, -1) - mean * scale
        h_bf = h_f32.astype(jnp.bfloat16).astype(jnp.float32)
        xn = h_bf * scale + shift
        return jnp.dot(xn.astype(jnp.bfloat16),
                       jnp.transpose(w).astype(jnp.bfloat16),
                       preferred_element_type=jnp.float32) + b.reshape(1, -1)

    h = prelu(layer(x, params["bn0_gamma"], params["bn0_beta"],
                    params["fc1_w"], params["fc1_b"]), params["prelu1"][0])
    h = prelu(layer(h, params["bn1_gamma"], params["bn1_beta"],
                    params["fc2_w"], params["fc2_b"]), params["prelu2"][0])
    return jnp.tanh(layer(h, params["bn2_gamma"], params["bn2_beta"],
                          params["fc3_w"], params["fc3_b"]))


if __name__ == "__main__":
    key = jax.random.PRNGKey(0)
    B, IN_DIM, MID_DIM, COMP_DIM = 256, 32, 64, 16
    MID2 = MID_DIM // 2

    ks = jax.random.split(key, 13)
    x = jax.random.normal(ks[0], (B, IN_DIM), dtype=jnp.float32)

    def xavier(k, shape):  # (out_features, in_features), xavier_uniform
        fan_out, fan_in = shape
        bound = (6.0 / (fan_in + fan_out)) ** 0.5
        return jax.random.uniform(k, shape, jnp.float32, -bound, bound)

    params = {
        # Non-trivial gamma/beta so the folded BN affine is actually exercised.
        "bn0_gamma": 1.0 + 0.1 * jax.random.normal(ks[7], (IN_DIM,), jnp.float32),
        "bn0_beta": 0.1 * jax.random.normal(ks[8], (IN_DIM,), jnp.float32),
        "fc1_w": xavier(ks[1], (MID_DIM, IN_DIM)),
        "fc1_b": 0.01 * jax.random.normal(ks[4], (MID_DIM,), jnp.float32),
        "prelu1": jnp.array([0.25], jnp.float32),
        "bn1_gamma": 1.0 + 0.1 * jax.random.normal(ks[9], (MID_DIM,), jnp.float32),
        "bn1_beta": 0.1 * jax.random.normal(ks[10], (MID_DIM,), jnp.float32),
        "fc2_w": xavier(ks[2], (MID2, MID_DIM)),
        "fc2_b": 0.01 * jax.random.normal(ks[5], (MID2,), jnp.float32),
        "prelu2": jnp.array([0.25], jnp.float32),
        "bn2_gamma": 1.0 + 0.1 * jax.random.normal(ks[11], (MID2,), jnp.float32),
        "bn2_beta": 0.1 * jax.random.normal(ks[12], (MID2,), jnp.float32),
        "fc3_w": xavier(ks[3], (COMP_DIM, MID2)),
        "fc3_b": 0.01 * jax.random.normal(ks[6], (COMP_DIM,), jnp.float32),
    }

    # block_rows=64 -> grid=(4 phases, 4 tiles): exercises multi-tile stats
    # accumulation and the VMEM-resident phase hand-off.
    out = jax.block_until_ready(meta_dense_forward(x, params, block_rows=64))

    ref_matched = _matched_reference(x, params)
    ref_f32 = _reference_forward(x, params)

    assert out.shape == (B, COMP_DIM)
    assert bool(jnp.all(jnp.isfinite(out)))
    # Tight check against a reference with the kernel's rounding points.
    assert jnp.allclose(out, ref_matched, atol=3e-3, rtol=3e-3), \
        float(jnp.max(jnp.abs(out - ref_matched)))
    # Looser check against the full-f32 (PyTorch-equivalent) reference.
    assert jnp.allclose(out, ref_f32, atol=7.5e-2, rtol=7.5e-2), \
        float(jnp.max(jnp.abs(out - ref_f32)))
    print("KERNEL_OK")
</pallas_src>

<mosaic_0001>
module attributes {stable_mosaic.version = 11 : i64} {
  func.func @_fused_kernel(%arg0: i32, %arg1: i32, %arg2: memref<2xf32, #tpu.memory_space<smem>>, %arg3: memref<64x32xf32, #tpu.memory_space<vmem>>, %arg4: memref<2x32xf32, #tpu.memory_space<vmem>>, %arg5: memref<32x64xbf16, #tpu.memory_space<vmem>>, %arg6: memref<1x64xf32, #tpu.memory_space<vmem>>, %arg7: memref<2x64xf32, #tpu.memory_space<vmem>>, %arg8: memref<64x32xbf16, #tpu.memory_space<vmem>>, %arg9: memref<1x32xf32, #tpu.memory_space<vmem>>, %arg10: memref<2x32xf32, #tpu.memory_space<vmem>>, %arg11: memref<32x16xbf16, #tpu.memory_space<vmem>>, %arg12: memref<1x16xf32, #tpu.memory_space<vmem>>, %arg13: memref<64x16xf32, #tpu.memory_space<vmem>>, %arg14: memref<4x64x32xbf16, #tpu.memory_space<vmem>>, %arg15: memref<4x64x64xbf16, #tpu.memory_space<vmem>>, %arg16: memref<4x64x32xbf16, #tpu.memory_space<vmem>>, %arg17: memref<2x32xf32, #tpu.memory_space<vmem>>, %arg18: memref<2x64xf32, #tpu.memory_space<vmem>>, %arg19: memref<2x32xf32, #tpu.memory_space<vmem>>) attributes {dimension_semantics = [#tpu.dimension_semantics<arbitrary>, #tpu.dimension_semantics<arbitrary>], iteration_bounds = array<i64: 4, 4>, scalar_prefetch = 0 : i64, scratch_operands = 6 : i64, tpu.core_type = #tpu.core_type<tc>, window_params = [{transform_indices = @transform_0, window_bounds = array<i64: 2>}, {transform_indices = @transform_1, window_bounds = array<i64: 64, 32>}, {pipeline_mode = #tpu.pipeline_mode<synchronous>, transform_indices = @transform_2, window_bounds = array<i64: 2, 32>}, {pipeline_mode = #tpu.pipeline_mode<synchronous>, transform_indices = @transform_3, window_bounds = array<i64: 32, 64>}, {pipeline_mode = #tpu.pipeline_mode<synchronous>, transform_indices = @transform_4, window_bounds = array<i64: 1, 64>}, {pipeline_mode = #tpu.pipeline_mode<synchronous>, transform_indices = @transform_5, window_bounds = array<i64: 2, 64>}, {pipeline_mode = #tpu.pipeline_mode<synchronous>, transform_indices = @transform_6, window_bounds = array<i64: 64, 32>}, {pipeline_mode = #tpu.pipeline_mode<synchronous>, transform_indices = @transform_7, window_bounds = array<i64: 1, 32>}, {pipeline_mode = #tpu.pipeline_mode<synchronous>, transform_indices = @transform_8, window_bounds = array<i64: 2, 32>}, {pipeline_mode = #tpu.pipeline_mode<synchronous>, transform_indices = @transform_9, window_bounds = array<i64: 32, 16>}, {pipeline_mode = #tpu.pipeline_mode<synchronous>, transform_indices = @transform_10, window_bounds = array<i64: 1, 16>}, {transform_indices = @transform_11, window_bounds = array<i64: 64, 16>}]} {
    %c0_i32 = arith.constant 0 : i32
    %0 = arith.cmpi eq, %arg0, %c0_i32 : i32
    %1 = arith.extui %0 : i1 to i32
    %c0_i32_0 = arith.constant 0 : i32
    %2 = arith.cmpi ne, %1, %c0_i32_0 : i32
    scf.if %2 {
      %c0_i32_4 = arith.constant 0 : i32
      %12 = arith.cmpi eq, %arg1, %c0_i32_4 : i32
      %13 = arith.extui %12 : i1 to i32
      %c0_i32_5 = arith.constant 0 : i32
      %14 = arith.cmpi ne, %13, %c0_i32_5 : i32
      scf.if %14 {
        %cst_17 = arith.constant 0.000000e+00 : f32
        %32 = vector.broadcast %cst_17 : f32 to vector<2x32xf32>
        %c0_18 = arith.constant 0 : index
        %c0_19 = arith.constant 0 : index
        %33 = vector.load %arg17[%c0_18, %c0_19] : memref<2x32xf32, #tpu.memory_space<vmem>>, vector<2x32xf32>
        tpu.vector_store %arg17[%c0_18, %c0_19], %32 {strides = array<i32>} : memref<2x32xf32, #tpu.memory_space<vmem>>, vector<2x32xf32>,
      } else {
      }
      %c0 = arith.constant 0 : index
      %c0_6 = arith.constant 0 : index
      %15 = vector.load %arg3[%c0, %c0_6] : memref<64x32xf32, #tpu.memory_space<vmem>>, vector<64x32xf32>
      %c0_7 = arith.constant 0 : index
      %c0_8 = arith.constant 0 : index
      %16 = vector.load %arg17[%c0_7, %c0_8] : memref<2x32xf32, #tpu.memory_space<vmem>>, vector<1x32xf32>
      %cst = arith.constant dense<0.000000e+00> : vector<32xf32>
      %17 = vector.multi_reduction <add>, %15, %cst [0] : vector<64x32xf32> to vector<32xf32>
      %18 = vector.shape_cast %17 : vector<32xf32> to vector<1x32xf32>
      %19 = arith.addf %16, %18 : vector<1x32xf32>
      %c0_9 = arith.constant 0 : index
      %c0_10 = arith.constant 0 : index
      %20 = vector.load %arg17[%c0_9, %c0_10] : memref<2x32xf32, #tpu.memory_space<vmem>>, vector<1x32xf32>
      tpu.vector_store %arg17[%c0_9, %c0_10], %19 {strides = array<i32>} : memref<2x32xf32, #tpu.memory_space<vmem>>, vector<1x32xf32>,
      %c1 = arith.constant 1 : index
      %c0_11 = arith.constant 0 : index
      %21 = vector.load %arg17[%c1, %c0_11] : memref<2x32xf32, #tpu.memory_space<vmem>>, vector<1x32xf32>
      %22 = arith.mulf %15, %15 : vector<64x32xf32>
      %cst_12 = arith.constant dense<0.000000e+00> : vector<32xf32>
      %23 = vector.multi_reduction <add>, %22, %cst_12 [0] : vector<64x32xf32> to vector<32xf32>
      %24 = vector.shape_cast %23 : vector<32xf32> to vector<1x32xf32>
      %25 = arith.addf %21, %24 : vector<1x32xf32>
      %c1_13 = arith.constant 1 : index
      %c0_14 = arith.constant 0 : index
      %26 = vector.load %arg17[%c1_13, %c0_14] : memref<2x32xf32, #tpu.memory_space<vmem>>, vector<1x32xf32>
      tpu.vector_store %arg17[%c1_13, %c0_14], %25 {strides = array<i32>} : memref<2x32xf32, #tpu.memory_space<vmem>>, vector<1x32xf32>,
      %27 = arith.truncf %15 : vector<64x32xf32> to vector<64x32xbf16>
      %28 = arith.index_cast %arg1 : i32 to index
      %c0_15 = arith.constant 0 : index
      %c0_16 = arith.constant 0 : index
      %29 = vector.load %arg14[%28, %c0_15, %c0_16] : memref<4x64x32xbf16, #tpu.memory_space<vmem>>, vector<1x64x32xbf16>
      %30 = vector.shape_cast %29 : vector<1x64x32xbf16> to vector<64x32xbf16>
      %31 = vector.shape_cast %27 : vector<64x32xbf16> to vector<1x64x32xbf16>
      tpu.vector_store %arg14[%28, %c0_15, %c0_16], %31 {strides = array<i32>} : memref<4x64x32xbf16, #tpu.memory_space<vmem>>, vector<1x64x32xbf16>,
    } else {
    }
    %c1_i32 = arith.constant 1 : i32
    %3 = arith.cmpi eq, %arg0, %c1_i32 : i32
    %4 = arith.extui %3 : i1 to i32
    %c0_i32_1 = arith.constant 0 : i32
    %5 = arith.cmpi ne, %4, %c0_i32_1 : i32
    scf.if %5 {
      %c0_i32_4 = arith.constant 0 : i32
      %12 = arith.cmpi eq, %arg1, %c0_i32_4 : i32
      %13 = arith.extui %12 : i1 to i32
      %c0_i32_5 = arith.constant 0 : i32
      %14 = arith.cmpi ne, %13, %c0_i32_5 : i32
      scf.if %14 {
        %c0_28 = arith.constant 0 : index
        %c0_29 = arith.constant 0 : index
        %53 = vector.load %arg17[%c0_28, %c0_29] : memref<2x32xf32, #tpu.memory_space<vmem>>, vector<1x32xf32>
        %cst_30 = arith.constant 3.906250e-03 : f32
        %54 = vector.broadcast %cst_30 : f32 to vector<1x32xf32>
        %55 = arith.mulf %53, %54 : vector<1x32xf32>
        %c1_31 = arith.constant 1 : index
        %c0_32 = arith.constant 0 : index
        %56 = vector.load %arg17[%c1_31, %c0_32] : memref<2x32xf32, #tpu.memory_space<vmem>>, vector<1x32xf32>
        %cst_33 = arith.constant 3.906250e-03 : f32
        %57 = vector.broadcast %cst_33 : f32 to vector<1x32xf32>
        %58 = arith.mulf %56, %57 : vector<1x32xf32>
        %59 = arith.mulf %55, %55 : vector<1x32xf32>
        %60 = arith.subf %58, %59 : vector<1x32xf32>
        %cst_34 = arith.constant 0.000000e+00 : f32
        %61 = vector.broadcast %cst_34 : f32 to vector<1x32xf32>
        %62 = arith.maximumf %60, %61 : vector<1x32xf32>
        %cst_35 = arith.constant 9.99999974E-6 : f32
        %63 = vector.broadcast %cst_35 : f32 to vector<1x32xf32>
        %64 = arith.addf %62, %63 : vector<1x32xf32>
        %65 = math.rsqrt %64 : vector<1x32xf32>
        %c0_36 = arith.constant 0 : index
        %c0_37 = arith.constant 0 : index
        %66 = vector.load %arg4[%c0_36, %c0_37] : memref<2x32xf32, #tpu.memory_space<vmem>>, vector<1x32xf32>
        %67 = arith.mulf %66, %65 : vector<1x32xf32>
        %c1_38 = arith.constant 1 : index
        %c0_39 = arith.constant 0 : index
        %68 = vector.load %arg4[%c1_38, %c0_39] : memref<2x32xf32, #tpu.memory_space<vmem>>, vector<1x32xf32>
        %69 = arith.mulf %55, %67 : vector<1x32xf32>
        %70 = arith.subf %68, %69 : vector<1x32xf32>
        %c0_40 = arith.constant 0 : index
        %c0_41 = arith.constant 0 : index
        %71 = vector.load %arg17[%c0_40, %c0_41] : memref<2x32xf32, #tpu.memory_space<vmem>>, vector<1x32xf32>
        tpu.vector_store %arg17[%c0_40, %c0_41], %67 {strides = array<i32>} : memref<2x32xf32, #tpu.memory_space<vmem>>, vector<1x32xf32>,
        %c1_42 = arith.constant 1 : index
        %c0_43 = arith.constant 0 : index
        %72 = vector.load %arg17[%c1_42, %c0_43] : memref<2x32xf32, #tpu.memory_space<vmem>>, vector<1x32xf32>
        tpu.vector_store %arg17[%c1_42, %c0_43], %70 {strides = array<i32>} : memref<2x32xf32, #tpu.memory_space<vmem>>, vector<1x32xf32>,
        %cst_44 = arith.constant 0.000000e+00 : f32
        %73 = vector.broadcast %cst_44 : f32 to vector<2x64xf32>
        %c0_45 = arith.constant 0 : index
        %c0_46 = arith.constant 0 : index
        %74 = vector.load %arg18[%c0_45, %c0_46] : memref<2x64xf32, #tpu.memory_space<vmem>>, vector<2x64xf32>
        tpu.vector_store %arg18[%c0_45, %c0_46], %73 {strides = array<i32>} : memref<2x64xf32, #tpu.memory_space<vmem>>, vector<2x64xf32>,
      } else {
      }
      %15 = arith.index_cast %arg1 : i32 to index
      %c0 = arith.constant 0 : index
      %c0_6 = arith.constant 0 : index
      %16 = vector.load %arg14[%15, %c0, %c0_6] : memref<4x64x32xbf16, #tpu.memory_space<vmem>>, vector<1x64x32xbf16>
      %17 = vector.shape_cast %16 : vector<1x64x32xbf16> to vector<64x32xbf16>
      %18 = arith.extf %17 : vector<64x32xbf16> to vector<64x32xf32>
      %c0_7 = arith.constant 0 : index
      %c0_8 = arith.constant 0 : index
      %19 = vector.load %arg17[%c0_7, %c0_8] : memref<2x32xf32, #tpu.memory_space<vmem>>, vector<1x32xf32>
      %20 = vector.broadcast %19 : vector<1x32xf32> to vector<64x32xf32>
      %21 = arith.mulf %18, %20 : vector<64x32xf32>
      %c1 = arith.constant 1 : index
      %c0_9 = arith.constant 0 : index
      %22 = vector.load %arg17[%c1, %c0_9] : memref<2x32xf32, #tpu.memory_space<vmem>>, vector<1x32xf32>
      %23 = vector.broadcast %22 : vector<1x32xf32> to vector<64x32xf32>
      %24 = arith.addf %21, %23 : vector<64x32xf32>
      %25 = arith.truncf %24 : vector<64x32xf32> to vector<64x32xbf16>
      %c0_10 = arith.constant 0 : index
      %c0_11 = arith.constant 0 : index
      %26 = vector.load %arg5[%c0_10, %c0_11] : memref<32x64xbf16, #tpu.memory_space<vmem>>, vector<32x64xbf16>
      %cst = arith.constant dense<0.000000e+00> : vector<64x64xf32>
      %27 = tpu.matmul %25, %26, %cst {dimension_numbers = #tpu.dot_dimension_numbers<[1], [0], [0], [1], [0, 0, 1, 1], [], []>} : vector<64x32xbf16>, vector<32x64xbf16>, vector<64x64xf32> -> vector<64x64xf32>
      %c0_12 = arith.constant 0 : index
      %c0_13 = arith.constant 0 : index
      %28 = vector.load %arg6[%c0_12, %c0_13] : memref<1x64xf32, #tpu.memory_space<vmem>>, vector<1x64xf32>
      %29 = vector.broadcast %28 : vector<1x64xf32> to vector<64x64xf32>
      %30 = arith.addf %27, %29 : vector<64x64xf32>
      %cst_14 = arith.constant 0.000000e+00 : f32
      %31 = vector.broadcast %cst_14 : f32 to vector<64x64xf32>
      %32 = arith.cmpf oge, %30, %31 : vector<64x64xf32>
      %c0_15 = arith.constant 0 : index
      %33 = memref.load %arg2[%c0_15] : memref<2xf32, #tpu.memory_space<smem>>
      %34 = vector.broadcast %33 : f32 to vector<64x64xf32>
      %35 = arith.mulf %34, %30 : vector<64x64xf32>
      %36 = arith.select %32, %30, %35 : vector<64x64xi1>, vector<64x64xf32>
      %c0_16 = arith.constant 0 : index
      %c0_17 = arith.constant 0 : index
      %37 = vector.load %arg18[%c0_16, %c0_17] : memref<2x64xf32, #tpu.memory_space<vmem>>, vector<1x64xf32>
      %cst_18 = arith.constant dense<0.000000e+00> : vector<64xf32>
      %38 = vector.multi_reduction <add>, %36, %cst_18 [0] : vector<64x64xf32> to vector<64xf32>
      %39 = vector.shape_cast %38 : vector<64xf32> to vector<1x64xf32>
      %40 = arith.addf %37, %39 : vector<1x64xf32>
      %c0_19 = arith.constant 0 : index
      %c0_20 = arith.constant 0 : index
      %41 = vector.load %arg18[%c0_19, %c0_20] : memref<2x64xf32, #tpu.memory_space<vmem>>, vector<1x64xf32>
      tpu.vector_store %arg18[%c0_19, %c0_20], %40 {strides = array<i32>} : memref<2x64xf32, #tpu.memory_space<vmem>>, vector<1x64xf32>,
      %c1_21 = arith.constant 1 : index
      %c0_22 = arith.constant 0 : index
      %42 = vector.load %arg18[%c1_21, %c0_22] : memref<2x64xf32, #tpu.memory_space<vmem>>, vector<1x64xf32>
      %43 = arith.mulf %36, %36 : vector<64x64xf32>
      %cst_23 = arith.constant dense<0.000000e+00> : vector<64xf32>
      %44 = vector.multi_reduction <add>, %43, %cst_23 [0] : vector<64x64xf32> to vector<64xf32>
      %45 = vector.shape_cast %44 : vector<64xf32> to vector<1x64xf32>
      %46 = arith.addf %42, %45 : vector<1x64xf32>
      %c1_24 = arith.constant 1 : index
      %c0_25 = arith.constant 0 : index
      %47 = vector.load %arg18[%c1_24, %c0_25] : memref<2x64xf32, #tpu.memory_space<vmem>>, vector<1x64xf32>
      tpu.vector_store %arg18[%c1_24, %c0_25], %46 {strides = array<i32>} : memref<2x64xf32, #tpu.memory_space<vmem>>, vector<1x64xf32>,
      %48 = arith.truncf %36 : vector<64x64xf32> to vector<64x64xbf16>
      %49 = arith.index_cast %arg1 : i32 to index
      %c0_26 = arith.constant 0 : index
      %c0_27 = arith.constant 0 : index
      %50 = vector.load %arg15[%49, %c0_26, %c0_27] : memref<4x64x64xbf16, #tpu.memory_space<vmem>>, vector<1x64x64xbf16>
      %51 = vector.shape_cast %50 : vector<1x64x64xbf16> to vector<64x64xbf16>
      %52 = vector.shape_cast %48 : vector<64x64xbf16> to vector<1x64x64xbf16>
      tpu.vector_store %arg15[%49, %c0_26, %c0_27], %52 {strides = array<i32>} : memref<4x64x64xbf16, #tpu.memory_space<vmem>>, vector<1x64x64xbf16>,
    } else {
    }
    %c2_i32 = arith.constant 2 : i32
    %6 = arith.cmpi eq, %arg0, %c2_i32 : i32
    %7 = arith.extui %6 : i1 to i32
    %c0_i32_2 = arith.constant 0 : i32
    %8 = arith.cmpi ne, %7, %c0_i32_2 : i32
    scf.if %8 {
      %c0_i32_4 = arith.constant 0 : i32
      %12 = arith.cmpi eq, %arg1, %c0_i32_4 : i32
      %13 = arith.extui %12 : i1 to i32
      %c0_i32_5 = arith.constant 0 : i32
      %14 = arith.cmpi ne, %13, %c0_i32_5 : i32
      scf.if %14 {
        %c0_28 = arith.constant 0 : index
        %c0_29 = arith.constant 0 : index
        %53 = vector.load %arg18[%c0_28, %c0_29] : memref<2x64xf32, #tpu.memory_space<vmem>>, vector<1x64xf32>
        %cst_30 = arith.constant 3.906250e-03 : f32
        %54 = vector.broadcast %cst_30 : f32 to vector<1x64xf32>
        %55 = arith.mulf %53, %54 : vector<1x64xf32>
        %c1_31 = arith.constant 1 : index
        %c0_32 = arith.constant 0 : index
        %56 = vector.load %arg18[%c1_31, %c0_32] : memref<2x64xf32, #tpu.memory_space<vmem>>, vector<1x64xf32>
        %cst_33 = arith.constant 3.906250e-03 : f32
        %57 = vector.broadcast %cst_33 : f32 to vector<1x64xf32>
        %58 = arith.mulf %56, %57 : vector<1x64xf32>
        %59 = arith.mulf %55, %55 : vector<1x64xf32>
        %60 = arith.subf %58, %59 : vector<1x64xf32>
        %cst_34 = arith.constant 0.000000e+00 : f32
        %61 = vector.broadcast %cst_34 : f32 to vector<1x64xf32>
        %62 = arith.maximumf %60, %61 : vector<1x64xf32>
        %cst_35 = arith.constant 9.99999974E-6 : f32
        %63 = vector.broadcast %cst_35 : f32 to vector<1x64xf32>
        %64 = arith.addf %62, %63 : vector<1x64xf32>
        %65 = math.rsqrt %64 : vector<1x64xf32>
        %c0_36 = arith.constant 0 : index
        %c0_37 = arith.constant 0 : index
        %66 = vector.load %arg7[%c0_36, %c0_37] : memref<2x64xf32, #tpu.memory_space<vmem>>, vector<1x64xf32>
        %67 = arith.mulf %66, %65 : vector<1x64xf32>
        %c1_38 = arith.constant 1 : index
        %c0_39 = arith.constant 0 : index
        %68 = vector.load %arg7[%c1_38, %c0_39] : memref<2x64xf32, #tpu.memory_space<vmem>>, vector<1x64xf32>
        %69 = arith.mulf %55, %67 : vector<1x64xf32>
        %70 = arith.subf %68, %69 : vector<1x64xf32>
        %c0_40 = arith.constant 0 : index
        %c0_41 = arith.constant 0 : index
        %71 = vector.load %arg18[%c0_40, %c0_41] : memref<2x64xf32, #tpu.memory_space<vmem>>, vector<1x64xf32>
        tpu.vector_store %arg18[%c0_40, %c0_41], %67 {strides = array<i32>} : memref<2x64xf32, #tpu.memory_space<vmem>>, vector<1x64xf32>,
        %c1_42 = arith.constant 1 : index
        %c0_43 = arith.constant 0 : index
        %72 = vector.load %arg18[%c1_42, %c0_43] : memref<2x64xf32, #tpu.memory_space<vmem>>, vector<1x64xf32>
        tpu.vector_store %arg18[%c1_42, %c0_43], %70 {strides = array<i32>} : memref<2x64xf32, #tpu.memory_space<vmem>>, vector<1x64xf32>,
        %cst_44 = arith.constant 0.000000e+00 : f32
        %73 = vector.broadcast %cst_44 : f32 to vector<2x32xf32>
        %c0_45 = arith.constant 0 : index
        %c0_46 = arith.constant 0 : index
        %74 = vector.load %arg19[%c0_45, %c0_46] : memref<2x32xf32, #tpu.memory_space<vmem>>, vector<2x32xf32>
        tpu.vector_store %arg19[%c0_45, %c0_46], %73 {strides = array<i32>} : memref<2x32xf32, #tpu.memory_space<vmem>>, vector<2x32xf32>,
      } else {
      }
      %15 = arith.index_cast %arg1 : i32 to index
      %c0 = arith.constant 0 : index
      %c0_6 = arith.constant 0 : index
      %16 = vector.load %arg15[%15, %c0, %c0_6] : memref<4x64x64xbf16, #tpu.memory_space<vmem>>, vector<1x64x64xbf16>
      %17 = vector.shape_cast %16 : vector<1x64x64xbf16> to vector<64x64xbf16>
      %18 = arith.extf %17 : vector<64x64xbf16> to vector<64x64xf32>
      %c0_7 = arith.constant 0 : index
      %c0_8 = arith.constant 0 : index
      %19 = vector.load %arg18[%c0_7, %c0_8] : memref<2x64xf32, #tpu.memory_space<vmem>>, vector<1x64xf32>
      %20 = vector.broadcast %19 : vector<1x64xf32> to vector<64x64xf32>
      %21 = arith.mulf %18, %20 : vector<64x64xf32>
      %c1 = arith.constant 1 : index
      %c0_9 = arith.constant 0 : index
      %22 = vector.load %arg18[%c1, %c0_9] : memref<2x64xf32, #tpu.memory_space<vmem>>, vector<1x64xf32>
      %23 = vector.broadcast %22 : vector<1x64xf32> to vector<64x64xf32>
      %24 = arith.addf %21, %23 : vector<64x64xf32>
      %25 = arith.truncf %24 : vector<64x64xf32> to vector<64x64xbf16>
      %c0_10 = arith.constant 0 : index
      %c0_11 = arith.constant 0 : index
      %26 = vector.load %arg8[%c0_10, %c0_11] : memref<64x32xbf16, #tpu.memory_space<vmem>>, vector<64x32xbf16>
      %cst = arith.constant dense<0.000000e+00> : vector<64x32xf32>
      %27 = tpu.matmul %25, %26, %cst {dimension_numbers = #tpu.dot_dimension_numbers<[1], [0], [0], [1], [0, 0, 1, 1], [], []>} : vector<64x64xbf16>, vector<64x32xbf16>, vector<64x32xf32> -> vector<64x32xf32>
      %c0_12 = arith.constant 0 : index
      %c0_13 = arith.constant 0 : index
      %28 = vector.load %arg9[%c0_12, %c0_13] : memref<1x32xf32, #tpu.memory_space<vmem>>, vector<1x32xf32>
      %29 = vector.broadcast %28 : vector<1x32xf32> to vector<64x32xf32>
      %30 = arith.addf %27, %29 : vector<64x32xf32>
      %cst_14 = arith.constant 0.000000e+00 : f32
      %31 = vector.broadcast %cst_14 : f32 to vector<64x32xf32>
      %32 = arith.cmpf oge, %30, %31 : vector<64x32xf32>
      %c1_15 = arith.constant 1 : index
      %33 = memref.load %arg2[%c1_15] : memref<2xf32, #tpu.memory_space<smem>>
      %34 = vector.broadcast %33 : f32 to vector<64x32xf32>
      %35 = arith.mulf %34, %30 : vector<64x32xf32>
      %36 = arith.select %32, %30, %35 : vector<64x32xi1>, vector<64x32xf32>
      %c0_16 = arith.constant 0 : index
      %c0_17 = arith.constant 0 : index
      %37 = vector.load %arg19[%c0_16, %c0_17] : memref<2x32xf32, #tpu.memory_space<vmem>>, vector<1x32xf32>
      %cst_18 = arith.constant dense<0.000000e+00> : vector<32xf32>
      %38 = vector.multi_reduction <add>, %36, %cst_18 [0] : vector<64x32xf32> to vector<32xf32>
      %39 = vector.shape_cast %38 : vector<32xf32> to vector<1x32xf32>
      %40 = arith.addf %37, %39 : vector<1x32xf32>
      %c0_19 = arith.constant 0 : index
      %c0_20 = arith.constant 0 : index
      %41 = vector.load %arg19[%c0_19, %c0_20] : memref<2x32xf32, #tpu.memory_space<vmem>>, vector<1x32xf32>
      tpu.vector_store %arg19[%c0_19, %c0_20], %40 {strides = array<i32>} : memref<2x32xf32, #tpu.memory_space<vmem>>, vector<1x32xf32>,
      %c1_21 = arith.constant 1 : index
      %c0_22 = arith.constant 0 : index
      %42 = vector.load %arg19[%c1_21, %c0_22] : memref<2x32xf32, #tpu.memory_space<vmem>>, vector<1x32xf32>
      %43 = arith.mulf %36, %36 : vector<64x32xf32>
      %cst_23 = arith.constant dense<0.000000e+00> : vector<32xf32>
      %44 = vector.multi_reduction <add>, %43, %cst_23 [0] : vector<64x32xf32> to vector<32xf32>
      %45 = vector.shape_cast %44 : vector<32xf32> to vector<1x32xf32>
      %46 = arith.addf %42, %45 : vector<1x32xf32>
      %c1_24 = arith.constant 1 : index
      %c0_25 = arith.constant 0 : index
      %47 = vector.load %arg19[%c1_24, %c0_25] : memref<2x32xf32, #tpu.memory_space<vmem>>, vector<1x32xf32>
      tpu.vector_store %arg19[%c1_24, %c0_25], %46 {strides = array<i32>} : memref<2x32xf32, #tpu.memory_space<vmem>>, vector<1x32xf32>,
      %48 = arith.truncf %36 : vector<64x32xf32> to vector<64x32xbf16>
      %49 = arith.index_cast %arg1 : i32 to index
      %c0_26 = arith.constant 0 : index
      %c0_27 = arith.constant 0 : index
      %50 = vector.load %arg16[%49, %c0_26, %c0_27] : memref<4x64x32xbf16, #tpu.memory_space<vmem>>, vector<1x64x32xbf16>
      %51 = vector.shape_cast %50 : vector<1x64x32xbf16> to vector<64x32xbf16>
      %52 = vector.shape_cast %48 : vector<64x32xbf16> to vector<1x64x32xbf16>
      tpu.vector_store %arg16[%49, %c0_26, %c0_27], %52 {strides = array<i32>} : memref<4x64x32xbf16, #tpu.memory_space<vmem>>, vector<1x64x32xbf16>,
    } else {
    }
    %c3_i32 = arith.constant 3 : i32
    %9 = arith.cmpi eq, %arg0, %c3_i32 : i32
    %10 = arith.extui %9 : i1 to i32
    %c0_i32_3 = arith.constant 0 : i32
    %11 = arith.cmpi ne, %10, %c0_i32_3 : i32
    scf.if %11 {
      %c0_i32_4 = arith.constant 0 : i32
      %12 = arith.cmpi eq, %arg1, %c0_i32_4 : i32
      %13 = arith.extui %12 : i1 to i32
      %c0_i32_5 = arith.constant 0 : i32
      %14 = arith.cmpi ne, %13, %c0_i32_5 : i32
      scf.if %14 {
        %c0_16 = arith.constant 0 : index
        %c0_17 = arith.constant 0 : index
        %33 = vector.load %arg19[%c0_16, %c0_17] : memref<2x32xf32, #tpu.memory_space<vmem>>, vector<1x32xf32>
        %cst_18 = arith.constant 3.906250e-03 : f32
        %34 = vector.broadcast %cst_18 : f32 to vector<1x32xf32>
        %35 = arith.mulf %33, %34 : vector<1x32xf32>
        %c1_19 = arith.constant 1 : index
        %c0_20 = arith.constant 0 : index
        %36 = vector.load %arg19[%c1_19, %c0_20] : memref<2x32xf32, #tpu.memory_space<vmem>>, vector<1x32xf32>
        %cst_21 = arith.constant 3.906250e-03 : f32
        %37 = vector.broadcast %cst_21 : f32 to vector<1x32xf32>
        %38 = arith.mulf %36, %37 : vector<1x32xf32>
        %39 = arith.mulf %35, %35 : vector<1x32xf32>
        %40 = arith.subf %38, %39 : vector<1x32xf32>
        %cst_22 = arith.constant 0.000000e+00 : f32
        %41 = vector.broadcast %cst_22 : f32 to vector<1x32xf32>
        %42 = arith.maximumf %40, %41 : vector<1x32xf32>
        %cst_23 = arith.constant 9.99999974E-6 : f32
        %43 = vector.broadcast %cst_23 : f32 to vector<1x32xf32>
        %44 = arith.addf %42, %43 : vector<1x32xf32>
        %45 = math.rsqrt %44 : vector<1x32xf32>
        %c0_24 = arith.constant 0 : index
        %c0_25 = arith.constant 0 : index
        %46 = vector.load %arg10[%c0_24, %c0_25] : memref<2x32xf32, #tpu.memory_space<vmem>>, vector<1x32xf32>
        %47 = arith.mulf %46, %45 : vector<1x32xf32>
        %c1_26 = arith.constant 1 : index
        %c0_27 = arith.constant 0 : index
        %48 = vector.load %arg10[%c1_26, %c0_27] : memref<2x32xf32, #tpu.memory_space<vmem>>, vector<1x32xf32>
        %49 = arith.mulf %35, %47 : vector<1x32xf32>
        %50 = arith.subf %48, %49 : vector<1x32xf32>
        %c0_28 = arith.constant 0 : index
        %c0_29 = arith.constant 0 : index
        %51 = vector.load %arg19[%c0_28, %c0_29] : memref<2x32xf32, #tpu.memory_space<vmem>>, vector<1x32xf32>
        tpu.vector_store %arg19[%c0_28, %c0_29], %47 {strides = array<i32>} : memref<2x32xf32, #tpu.memory_space<vmem>>, vector<1x32xf32>,
        %c1_30 = arith.constant 1 : index
        %c0_31 = arith.constant 0 : index
        %52 = vector.load %arg19[%c1_30, %c0_31] : memref<2x32xf32, #tpu.memory_space<vmem>>, vector<1x32xf32>
        tpu.vector_store %arg19[%c1_30, %c0_31], %50 {strides = array<i32>} : memref<2x32xf32, #tpu.memory_space<vmem>>, vector<1x32xf32>,
      } else {
      }
      %15 = arith.index_cast %arg1 : i32 to index
      %c0 = arith.constant 0 : index
      %c0_6 = arith.constant 0 : index
      %16 = vector.load %arg16[%15, %c0, %c0_6] : memref<4x64x32xbf16, #tpu.memory_space<vmem>>, vector<1x64x32xbf16>
      %17 = vector.shape_cast %16 : vector<1x64x32xbf16> to vector<64x32xbf16>
      %18 = arith.extf %17 : vector<64x32xbf16> to vector<64x32xf32>
      %c0_7 = arith.constant 0 : index
      %c0_8 = arith.constant 0 : index
      %19 = vector.load %arg19[%c0_7, %c0_8] : memref<2x32xf32, #tpu.memory_space<vmem>>, vector<1x32xf32>
      %20 = vector.broadcast %19 : vector<1x32xf32> to vector<64x32xf32>
      %21 = arith.mulf %18, %20 : vector<64x32xf32>
      %c1 = arith.constant 1 : index
      %c0_9 = arith.constant 0 : index
      %22 = vector.load %arg19[%c1, %c0_9] : memref<2x32xf32, #tpu.memory_space<vmem>>, vector<1x32xf32>
      %23 = vector.broadcast %22 : vector<1x32xf32> to vector<64x32xf32>
      %24 = arith.addf %21, %23 : vector<64x32xf32>
      %25 = arith.truncf %24 : vector<64x32xf32> to vector<64x32xbf16>
      %c0_10 = arith.constant 0 : index
      %c0_11 = arith.constant 0 : index
      %26 = vector.load %arg11[%c0_10, %c0_11] : memref<32x16xbf16, #tpu.memory_space<vmem>>, vector<32x16xbf16>
      %cst = arith.constant dense<0.000000e+00> : vector<64x16xf32>
      %27 = tpu.matmul %25, %26, %cst {dimension_numbers = #tpu.dot_dimension_numbers<[1], [0], [0], [1], [0, 0, 1, 1], [], []>} : vector<64x32xbf16>, vector<32x16xbf16>, vector<64x16xf32> -> vector<64x16xf32>
      %c0_12 = arith.constant 0 : index
      %c0_13 = arith.constant 0 : index
      %28 = vector.load %arg12[%c0_12, %c0_13] : memref<1x16xf32, #tpu.memory_space<vmem>>, vector<1x16xf32>
      %29 = vector.broadcast %28 : vector<1x16xf32> to vector<64x16xf32>
      %30 = arith.addf %27, %29 : vector<64x16xf32>
      %31 = math.tanh %30 : vector<64x16xf32>
      %c0_14 = arith.constant 0 : index
      %c0_15 = arith.constant 0 : index
      %32 = vector.load %arg13[%c0_14, %c0_15] : memref<64x16xf32, #tpu.memory_space<vmem>>, vector<64x16xf32>
      tpu.vector_store %arg13[%c0_14, %c0_15], %31 {strides = array<i32>} : memref<64x16xf32, #tpu.memory_space<vmem>>, vector<64x16xf32>,
    } else {
    }
    return
  }
  func.func @transform_0(%arg0: i32, %arg1: i32) -> i32 {
    %c0_i32 = arith.constant 0 : i32
    %c0_i32_0 = arith.constant 0 : i32
    return %c0_i32 : i32
  }
  func.func @transform_1(%arg0: i32, %arg1: i32) -> (i32, i32) {
    %c0_i32 = arith.constant 0 : i32
    %0 = arith.cmpi eq, %arg0, %c0_i32 : i32
    %c0_i32_0 = arith.constant 0 : i32
    %1 = arith.select %0, %arg1, %c0_i32_0 : i32
    %c0_i32_1 = arith.constant 0 : i32
    %c0_i32_2 = arith.constant 0 : i32
    return %1, %c0_i32_1 : i32, i32
  }
  func.func @transform_2(%arg0: i32, %arg1: i32) -> (i32, i32) {
    %c0_i32 = arith.constant 0 : i32
    %c0_i32_0 = arith.constant 0 : i32
    %c0_i32_1 = arith.constant 0 : i32
    return %c0_i32, %c0_i32_0 : i32, i32
  }
  func.func @transform_3(%arg0: i32, %arg1: i32) -> (i32, i32) {
    %c0_i32 = arith.constant 0 : i32
    %c0_i32_0 = arith.constant 0 : i32
    %c0_i32_1 = arith.constant 0 : i32
    return %c0_i32, %c0_i32_0 : i32, i32
  }
  func.func @transform_4(%arg0: i32, %arg1: i32) -> (i32, i32) {
    %c0_i32 = arith.constant 0 : i32
    %c0_i32_0 = arith.constant 0 : i32
    %c0_i32_1 = arith.constant 0 : i32
    return %c0_i32, %c0_i32_0 : i32, i32
  }
  func.func @transform_5(%arg0: i32, %arg1: i32) -> (i32, i32) {
    %c0_i32 = arith.constant 0 : i32
    %c0_i32_0 = arith.constant 0 : i32
    %c0_i32_1 = arith.constant 0 : i32
    return %c0_i32, %c0_i32_0 : i32, i32
  }
  func.func @transform_6(%arg0: i32, %arg1: i32) -> (i32, i32) {
    %c0_i32 = arith.constant 0 : i32
    %c0_i32_0 = arith.constant 0 : i32
    %c0_i32_1 = arith.constant 0 : i32
    return %c0_i32, %c0_i32_0 : i32, i32
  }
  func.func @transform_7(%arg0: i32, %arg1: i32) -> (i32, i32) {
    %c0_i32 = arith.constant 0 : i32
    %c0_i32_0 = arith.constant 0 : i32
    %c0_i32_1 = arith.constant 0 : i32
    return %c0_i32, %c0_i32_0 : i32, i32
  }
  func.func @transform_8(%arg0: i32, %arg1: i32) -> (i32, i32) {
    %c0_i32 = arith.constant 0 : i32
    %c0_i32_0 = arith.constant 0 : i32
    %c0_i32_1 = arith.constant 0 : i32
    return %c0_i32, %c0_i32_0 : i32, i32
  }
  func.func @transform_9(%arg0: i32, %arg1: i32) -> (i32, i32) {
    %c0_i32 = arith.constant 0 : i32
    %c0_i32_0 = arith.constant 0 : i32
    %c0_i32_1 = arith.constant 0 : i32
    return %c0_i32, %c0_i32_0 : i32, i32
  }
  func.func @transform_10(%arg0: i32, %arg1: i32) -> (i32, i32) {
    %c0_i32 = arith.constant 0 : i32
    %c0_i32_0 = arith.constant 0 : i32
    %c0_i32_1 = arith.constant 0 : i32
    return %c0_i32, %c0_i32_0 : i32, i32
  }
  func.func @transform_11(%arg0: i32, %arg1: i32) -> (i32, i32) {
    %c3_i32 = arith.constant 3 : i32
    %0 = arith.cmpi eq, %arg0, %c3_i32 : i32
    %c0_i32 = arith.constant 0 : i32
    %1 = arith.select %0, %arg1, %c0_i32 : i32
    %c0_i32_0 = arith.constant 0 : i32
    %c0_i32_1 = arith.constant 0 : i32
    return %1, %c0_i32_0 : i32, i32
  }
}

</mosaic_0001>

<llo_original>
// kernel: meta_dense_forward.1
$region0: #{meta_dense_forward.1}
  #allocation0 [shape = 'u32[]', space=smem, size = 0x4, offset = 0x4, fixed_abs, tag = 'smem constant byte address 0x4 - core index']
  #allocation1 [shape = 'u32[72,128]{1,0:T(1,128)}', space=vmem, size = 0x9000, scoped, tag = 'internal scratch']
  #allocation2 [shape = 'bf16[4,64,32]{2,1,0:T(8,128)(2,1)}', space=vmem, size = 0x10000, scoped, tag = 'scratch operand']
  #allocation3 [shape = 'bf16[4,64,64]{2,1,0:T(8,128)(2,1)}', space=vmem, size = 0x10000, scoped, tag = 'scratch operand']
  #allocation4 [shape = 'bf16[4,64,32]{2,1,0:T(8,128)(2,1)}', space=vmem, size = 0x10000, scoped, tag = 'scratch operand']
  #allocation5 [shape = 'f32[2,32]{1,0:T(2,128)}', space=vmem, size = 0x400, scoped, tag = 'scratch operand']
  #allocation6 [shape = 'f32[2,64]{1,0:T(2,128)}', space=vmem, size = 0x400, scoped, tag = 'scratch operand']
  #allocation7 [shape = 'f32[2,32]{1,0:T(2,128)}', space=vmem, size = 0x400, scoped, tag = 'scratch operand']
  %s0 = inlined_call_operand.vmem [shape: f32[2], index: 0, kind: input, shape index: {}]
  %s1 = inlined_call_operand.vmem [shape: f32[256,32], index: 1, kind: input, shape index: {}]
  %s2 = inlined_call_operand.vmem [shape: f32[2,32], index: 2, kind: input, shape index: {}]
  %s3 = inlined_call_operand.vmem [shape: bf16[32,64], index: 3, kind: input, shape index: {}]
  %s4 = inlined_call_operand.vmem [shape: f32[1,64], index: 4, kind: input, shape index: {}]
  %s5 = inlined_call_operand.vmem [shape: f32[2,64], index: 5, kind: input, shape index: {}]
  %s6 = inlined_call_operand.vmem [shape: bf16[64,32], index: 6, kind: input, shape index: {}]
  %s7 = inlined_call_operand.vmem [shape: f32[1,32], index: 7, kind: input, shape index: {}]
  %s8 = inlined_call_operand.vmem [shape: f32[2,32], index: 8, kind: input, shape index: {}]
  %s9 = inlined_call_operand.vmem [shape: bf16[32,16], index: 9, kind: input, shape index: {}]
  %s10 = inlined_call_operand.vmem [shape: f32[1,16], index: 10, kind: input, shape index: {}]
  %s11 = inlined_call_operand.vmem [shape: f32[256,16], index: 11, kind: output, shape index: {}]
  %s12 = sld [smem:[#allocation0]]
  $region113: #{meta_dense_forward.1} parent=0
    _
  %s14 = ssub.s32 1, %s12
  %s15 = scalar_select 0, %s14, %s12
  $region1: #{meta_dense_forward.1} parent=0
    #allocation8 [shape = 'u8[512]{0}', space=smem, size = 0x200, scoped, tag = 'input window, operand 0, single buffered']
    #allocation9 [shape = 's32[2]{0}', space=sflag, size = 0x8, scoped, tag = 'scoped memory for meta_dense_forward.1']
    %16 = vsyncpa [#allocation9], 0
    loop: start=0, step=1, limit=18
    $region2: #{meta_dense_forward.1} parent=1 // loop_pre_header
      _
    $region3: #{meta_dense_forward.1} parent=1 // loop_header
      %s18 = sphi 0, %s22
      %p19 = scmp.ge.s32.totalorder %s18, 18
      %s25 = sphi 0, %s37
      %s26 = sphi 0, %s33
      %s27 = sphi 0, %s25
      %s28 = sphi 0, %s26
      %s29 = sphi 0, %s27
      %s30 = sphi 0, %s28
      %s38 = sphi 0, %s38
      %s40 = sphi 0, %s38
      %s41 = sphi 0, %s40
      %s55 = sphi 0, %s41
      %s65 = sphi 0, %s67
      %s68 = sphi 0, %s65
      %s69 = sphi 0, %s68
      %s85 = sphi 0, %s69
      %s89 = sphi 0, %s89
      %s91 = sphi 0, %s89
      %s92 = sphi 0, %s91
      %s106 = sphi 0, %s92
      %s110 = sphi 0, %s110
      %s112 = sphi 0, %s110
      %s113 = sphi 0, %s112
      %s127 = sphi 0, %s113
      %s131 = sphi 0, %s131
      %s133 = sphi 0, %s131
      %s134 = sphi 0, %s133
      %s148 = sphi 0, %s134
      %s152 = sphi 0, %s152
      %s154 = sphi 0, %s152
      %s155 = sphi 0, %s154
      %s169 = sphi 0, %s155
      %s173 = sphi 0, %s173
      %s175 = sphi 0, %s173
      %s176 = sphi 0, %s175
      %s190 = sphi 0, %s176
      %s194 = sphi 0, %s194
      %s196 = sphi 0, %s194
      %s197 = sphi 0, %s196
      %s211 = sphi 0, %s197
      %s215 = sphi 0, %s215
      %s217 = sphi 0, %s215
      %s218 = sphi 0, %s217
      %s232 = sphi 0, %s218
      %s236 = sphi 0, %s236
      %s238 = sphi 0, %s236
      %s239 = sphi 0, %s238
      %s253 = sphi 0, %s239
      %s257 = sphi 0, %s257
      %s259 = sphi 0, %s257
      %s260 = sphi 0, %s259
      %s274 = sphi 0, %s260
      %s284 = sphi 0, %s286
      %s287 = sphi 0, %s284
      %s288 = sphi 0, %s287
      %s304 = sphi 0, %s288
    $region4: #{meta_dense_forward.1} parent=1 // loop_header_branch
      %21 = sbr.rel (%p19) target = $region8
    $region5: #{meta_dense_forward.1} parent=1 // loop_body
      %s23 = ssub.s32 %s18, 1
      %s24 = ssub.s32 %s18, 2
      %s31 = sadd.s32 1, %s26
      %p32 = scmp.ge.s32.totalorder %s31, 4
      %s33 = scalar_select %p32, 0, %s31
      %s34 = sadd.s32 1, %s25
      %s35 = scalar_select %p32, %s34, %s25
      %p36 = scmp.ge.s32.totalorder %s35, 4
      %s37 = scalar_select %p36, 0, %s35
      %s39 = sadd.s32 %s38, 1
      %p42 = scmp.eq.s32.totalorder %s18, 15
      %p43 = scmp.ne.s32.totalorder %s38, %s40
      %p44 = scmp.eq.s32.totalorder %s18, 0
      %p45 = por %p43, %p44
      %p46 = scmp.ne.s32.totalorder %s38, %s40
      %p47 = scmp.eq.s32.totalorder %s23, 15
      %p48 = por %p46, %p47
      %p49 = scmp.ne.s32.totalorder %s40, %s41
      %p50 = scmp.eq.s32.totalorder %s23, 0
      %p51 = por %p49, %p50
      %p52 = scmp.ne.s32.totalorder %s40, %s41
      %p53 = scmp.eq.s32.totalorder %s24, 15
      %p54 = por %p52, %p53
      %p56 = scmp.ne.s32.totalorder %s41, %s55
      %p57 = scmp.eq.s32.totalorder %s24, 0
      %p58 = por %p56, %p57
      %p59 = scmp.eq.s32.totalorder %s25, 0
      %s60 = scalar_select %p59, %s26, 0
      %p61 = scmp.eq.s32.totalorder %s37, 0
      %s62 = scalar_select %p61, %s33, 0
      %s63 = ssub.s32 %s60, %s62
      %p64 = scmp.eq.s32.totalorder %s63, 0
      %s66 = sadd.s32 %s65, 1
      %s67 = scalar_select %p64, %s65, %s66
      %p70 = pneg %p64
      %p71 = scmp.eq.s32.totalorder %s18, 15
      %p72 = por %p70, %p71
      %p73 = scmp.ne.s32.totalorder %s65, %s68
      %p74 = scmp.eq.s32.totalorder %s18, 0
      %p75 = por %p73, %p74
      %p76 = scmp.ne.s32.totalorder %s65, %s68
      %p77 = scmp.eq.s32.totalorder %s23, 15
      %p78 = por %p76, %p77
      %p79 = scmp.ne.s32.totalorder %s68, %s69
      %p80 = scmp.eq.s32.totalorder %s23, 0
      %p81 = por %p79, %p80
      %p82 = scmp.ne.s32.totalorder %s68, %s69
      %p83 = scmp.eq.s32.totalorder %s24, 15
      %p84 = por %p82, %p83
      %p86 = scmp.ne.s32.totalorder %s69, %s85
      %p87 = scmp.eq.s32.totalorder %s24, 0
      %p88 = por %p86, %p87
      %s90 = sadd.s32 %s89, 1
      %p93 = scmp.eq.s32.totalorder %s18, 15
      %p94 = scmp.ne.s32.totalorder %s89, %s91
      %p95 = scmp.eq.s32.totalorder %s18, 0
      %p96 = por %p94, %p95
      %p97 = scmp.ne.s32.totalorder %s89, %s91
      %p98 = scmp.eq.s32.totalorder %s23, 15
      %p99 = por %p97, %p98
      %p100 = scmp.ne.s32.totalorder %s91, %s92
      %p101 = scmp.eq.s32.totalorder %s23, 0
      %p102 = por %p100, %p101
      %p103 = scmp.ne.s32.totalorder %s91, %s92
      %p104 = scmp.eq.s32.totalorder %s24, 15
      %p105 = por %p103, %p104
      %p107 = scmp.ne.s32.totalorder %s92, %s106
      %p108 = scmp.eq.s32.totalorder %s24, 0
      %p109 = por %p107, %p108
      %s111 = sadd.s32 %s110, 1
      %p114 = scmp.eq.s32.totalorder %s18, 15
      %p115 = scmp.ne.s32.totalorder %s110, %s112
      %p116 = scmp.eq.s32.totalorder %s18, 0
      %p117 = por %p115, %p116
      %p118 = scmp.ne.s32.totalorder %s110, %s112
      %p119 = scmp.eq.s32.totalorder %s23, 15
      %p120 = por %p118, %p119
      %p121 = scmp.ne.s32.totalorder %s112, %s113
      %p122 = scmp.eq.s32.totalorder %s23, 0
      %p123 = por %p121, %p122
      %p124 = scmp.ne.s32.totalorder %s112, %s113
      %p125 = scmp.eq.s32.totalorder %s24, 15
      %p126 = por %p124, %p125
      %p128 = scmp.ne.s32.totalorder %s113, %s127
      %p129 = scmp.eq.s32.totalorder %s24, 0
      %p130 = por %p128, %p129
      %s132 = sadd.s32 %s131, 1
      %p135 = scmp.eq.s32.totalorder %s18, 15
      %p136 = scmp.ne.s32.totalorder %s131, %s133
      %p137 = scmp.eq.s32.totalorder %s18, 0
      %p138 = por %p136, %p137
      %p139 = scmp.ne.s32.totalorder %s131, %s133
      %p140 = scmp.eq.s32.totalorder %s23, 15
      %p141 = por %p139, %p140
      %p142 = scmp.ne.s32.totalorder %s133, %s134
      %p143 = scmp.eq.s32.totalorder %s23, 0
      %p144 = por %p142, %p143
      %p145 = scmp.ne.s32.totalorder %s133, %s134
      %p146 = scmp.eq.s32.totalorder %s24, 15
      %p147 = por %p145, %p146
      %p149 = scmp.ne.s32.totalorder %s134, %s148
      %p150 = scmp.eq.s32.totalorder %s24, 0
      %p151 = por %p149, %p150
      %s153 = sadd.s32 %s152, 1
      %p156 = scmp.eq.s32.totalorder %s18, 15
      %p157 = scmp.ne.s32.totalorder %s152, %s154
      %p158 = scmp.eq.s32.totalorder %s18, 0
      %p159 = por %p157, %p158
      %p160 = scmp.ne.s32.totalorder %s152, %s154
      %p161 = scmp.eq.s32.totalorder %s23, 15
      %p162 = por %p160, %p161
      %p163 = scmp.ne.s32.totalorder %s154, %s155
      %p164 = scmp.eq.s32.totalorder %s23, 0
      %p165 = por %p163, %p164
      %p166 = scmp.ne.s32.totalorder %s154, %s155
      %p167 = scmp.eq.s32.totalorder %s24, 15
      %p168 = por %p166, %p167
      %p170 = scmp.ne.s32.totalorder %s155, %s169
      %p171 = scmp.eq.s32.totalorder %s24, 0
      %p172 = por %p170, %p171
      %s174 = sadd.s32 %s173, 1
      %p177 = scmp.eq.s32.totalorder %s18, 15
      %p178 = scmp.ne.s32.totalorder %s173, %s175
      %p179 = scmp.eq.s32.totalorder %s18, 0
      %p180 = por %p178, %p179
      %p181 = scmp.ne.s32.totalorder %s173, %s175
      %p182 = scmp.eq.s32.totalorder %s23, 15
      %p183 = por %p181, %p182
      %p184 = scmp.ne.s32.totalorder %s175, %s176
      %p185 = scmp.eq.s32.totalorder %s23, 0
      %p186 = por %p184, %p185
      %p187 = scmp.ne.s32.totalorder %s175, %s176
      %p188 = scmp.eq.s32.totalorder %s24, 15
      %p189 = por %p187, %p188
      %p191 = scmp.ne.s32.totalorder %s176, %s190
      %p192 = scmp.eq.s32.totalorder %s24, 0
      %p193 = por %p191, %p192
      %s195 = sadd.s32 %s194, 1
      %p198 = scmp.eq.s32.totalorder %s18, 15
      %p199 = scmp.ne.s32.totalorder %s194, %s196
      %p200 = scmp.eq.s32.totalorder %s18, 0
      %p201 = por %p199, %p200
      %p202 = scmp.ne.s32.totalorder %s194, %s196
      %p203 = scmp.eq.s32.totalorder %s23, 15
      %p204 = por %p202, %p203
      %p205 = scmp.ne.s32.totalorder %s196, %s197
      %p206 = scmp.eq.s32.totalorder %s23, 0
      %p207 = por %p205, %p206
      %p208 = scmp.ne.s32.totalorder %s196, %s197
      %p209 = scmp.eq.s32.totalorder %s24, 15
      %p210 = por %p208, %p209
      %p212 = scmp.ne.s32.totalorder %s197, %s211
      %p213 = scmp.eq.s32.totalorder %s24, 0
      %p214 = por %p212, %p213
      %s216 = sadd.s32 %s215, 1
      %p219 = scmp.eq.s32.totalorder %s18, 15
      %p220 = scmp.ne.s32.totalorder %s215, %s217
      %p221 = scmp.eq.s32.totalorder %s18, 0
      %p222 = por %p220, %p221
      %p223 = scmp.ne.s32.totalorder %s215, %s217
      %p224 = scmp.eq.s32.totalorder %s23, 15
      %p225 = por %p223, %p224
      %p226 = scmp.ne.s32.totalorder %s217, %s218
      %p227 = scmp.eq.s32.totalorder %s23, 0
      %p228 = por %p226, %p227
      %p229 = scmp.ne.s32.totalorder %s217, %s218
      %p230 = scmp.eq.s32.totalorder %s24, 15
      %p231 = por %p229, %p230
      %p233 = scmp.ne.s32.totalorder %s218, %s232
      %p234 = scmp.eq.s32.totalorder %s24, 0
      %p235 = por %p233, %p234
      %s237 = sadd.s32 %s236, 1
      %p240 = scmp.eq.s32.totalorder %s18, 15
      %p241 = scmp.ne.s32.totalorder %s236, %s238
      %p242 = scmp.eq.s32.totalorder %s18, 0
      %p243 = por %p241, %p242
      %p244 = scmp.ne.s32.totalorder %s236, %s238
      %p245 = scmp.eq.s32.totalorder %s23, 15
      %p246 = por %p244, %p245
      %p247 = scmp.ne.s32.totalorder %s238, %s239
      %p248 = scmp.eq.s32.totalorder %s23, 0
      %p249 = por %p247, %p248
      %p250 = scmp.ne.s32.totalorder %s238, %s239
      %p251 = scmp.eq.s32.totalorder %s24, 15
      %p252 = por %p250, %p251
      %p254 = scmp.ne.s32.totalorder %s239, %s253
      %p255 = scmp.eq.s32.totalorder %s24, 0
      %p256 = por %p254, %p255
      %s258 = sadd.s32 %s257, 1
      %p261 = scmp.eq.s32.totalorder %s18, 15
      %p262 = scmp.ne.s32.totalorder %s257, %s259
      %p263 = scmp.eq.s32.totalorder %s18, 0
      %p264 = por %p262, %p263
      %p265 = scmp.ne.s32.totalorder %s257, %s259
      %p266 = scmp.eq.s32.totalorder %s23, 15
      %p267 = por %p265, %p266
      %p268 = scmp.ne.s32.totalorder %s259, %s260
      %p269 = scmp.eq.s32.totalorder %s23, 0
      %p270 = por %p268, %p269
      %p271 = scmp.ne.s32.totalorder %s259, %s260
      %p272 = scmp.eq.s32.totalorder %s24, 15
      %p273 = por %p271, %p272
      %p275 = scmp.ne.s32.totalorder %s260, %s274
      %p276 = scmp.eq.s32.totalorder %s24, 0
      %p277 = por %p275, %p276
      %p278 = scmp.eq.s32.totalorder %s25, 3
      %s279 = scalar_select %p278, %s26, 0
      %p280 = scmp.eq.s32.totalorder %s37, 3
      %s281 = scalar_select %p280, %s33, 0
      %s282 = ssub.s32 %s279, %s281
      %p283 = scmp.eq.s32.totalorder %s282, 0
      %s285 = sadd.s32 %s284, 1
      %s286 = scalar_select %p283, %s284, %s285
      %p289 = pneg %p283
      %p290 = scmp.eq.s32.totalorder %s18, 15
      %p291 = por %p289, %p290
      %p292 = scmp.ne.s32.totalorder %s284, %s287
      %p293 = scmp.eq.s32.totalorder %s18, 0
      %p294 = por %p292, %p293
      %p295 = scmp.ne.s32.totalorder %s284, %s287
      %p296 = scmp.eq.s32.totalorder %s23, 15
      %p297 = por %p295, %p296
      %p298 = scmp.ne.s32.totalorder %s287, %s288
      %p299 = scmp.eq.s32.totalorder %s23, 0
      %p300 = por %p298, %p299
      %p301 = scmp.ne.s32.totalorder %s287, %s288
      %p302 = scmp.eq.s32.totalorder %s24, 15
      %p303 = por %p301, %p302
      %p305 = scmp.ne.s32.totalorder %s288, %s304
      %p306 = scmp.eq.s32.totalorder %s24, 0
      %p307 = por %p305, %p306
      %p308 = scmp.le.s32.totalorder 1, %s18
      %p309 = scmp.lt.s32.totalorder %s18, 17
      %p310 = pnand %p308, %p309
      %p311 = pneg %p310
      // Predicated region
      $region9: #{meta_dense_forward.1} parent=5 // pred_check
        _
      $region10: #{meta_dense_forward.1} parent=5 // pred_check_branch
        %313 = sbr.rel (%p310) target = $region12
      $region11: #{meta_dense_forward.1} parent=5 // pred_region
        %s314 = ssub.s32 %s18, 1
        // Predicated region
        $region13: #{meta_dense_forward.1} parent=11 // pred_check
          %p315 = pneg %p51
        $region14: #{meta_dense_forward.1} parent=11 // pred_check_branch
          %317 = sbr.rel (%p315) target = $region16
        $region15: #{meta_dense_forward.1} parent=11 // pred_region
          %319 = vsyncadd [#allocation9], 0
          %s321 = sshll.u32 %s0, 4
          %s322 = int_to_ptr.vmem [resolvable:$true] %s321
          %324 = dma.vmem_to_smem %s322, 16, [#allocation8], [#allocation9]
        $region16: #{meta_dense_forward.1} parent=11 // pred_fallthru
          _
        // Predicated region
        $region17: #{meta_dense_forward.1} parent=11 // pred_check
          %p325 = pneg %p102
        $region18: #{meta_dense_forward.1} parent=11 // pred_check_branch
          %327 = sbr.rel (%p325) target = $region20
        $region19: #{meta_dense_forward.1} parent=11 // pred_region
          _
        $region20: #{meta_dense_forward.1} parent=11 // pred_fallthru
          _
        // Predicated region
        $region21: #{meta_dense_forward.1} parent=11 // pred_check
          %p328 = pneg %p123
        $region22: #{meta_dense_forward.1} parent=11 // pred_check_branch
          %330 = sbr.rel (%p328) target = $region24
        $region23: #{meta_dense_forward.1} parent=11 // pred_region
          _
        $region24: #{meta_dense_forward.1} parent=11 // pred_fallthru
          _
        // Predicated region
        $region25: #{meta_dense_forward.1} parent=11 // pred_check
          %p331 = pneg %p144
        $region26: #{meta_dense_forward.1} parent=11 // pred_check_branch
          %333 = sbr.rel (%p331) target = $region28
        $region27: #{meta_dense_forward.1} parent=11 // pred_region
          _
        $region28: #{meta_dense_forward.1} parent=11 // pred_fallthru
          _
        // Predicated region
        $region29: #{meta_dense_forward.1} parent=11 // pred_check
          %p334 = pneg %p165
        $region30: #{meta_dense_forward.1} parent=11 // pred_check_branch
          %336 = sbr.rel (%p334) target = $region32
        $region31: #{meta_dense_forward.1} parent=11 // pred_region
          _
        $region32: #{meta_dense_forward.1} parent=11 // pred_fallthru
          _
        // Predicated region
        $region33: #{meta_dense_forward.1} parent=11 // pred_check
          %p337 = pneg %p186
        $region34: #{meta_dense_forward.1} parent=11 // pred_check_branch
          %339 = sbr.rel (%p337) target = $region36
        $region35: #{meta_dense_forward.1} parent=11 // pred_region
          _
        $region36: #{meta_dense_forward.1} parent=11 // pred_fallthru
          _
        // Predicated region
        $region37: #{meta_dense_forward.1} parent=11 // pred_check
          %p340 = pneg %p207
        $region38: #{meta_dense_forward.1} parent=11 // pred_check_branch
          %342 = sbr.rel (%p340) target = $region40
        $region39: #{meta_dense_forward.1} parent=11 // pred_region
          _
        $region40: #{meta_dense_forward.1} parent=11 // pred_fallthru
          _
        // Predicated region
        $region41: #{meta_dense_forward.1} parent=11 // pred_check
          %p343 = pneg %p228
        $region42: #{meta_dense_forward.1} parent=11 // pred_check_branch
          %345 = sbr.rel (%p343) target = $region44
        $region43: #{meta_dense_forward.1} parent=11 // pred_region
          _
        $region44: #{meta_dense_forward.1} parent=11 // pred_fallthru
          _
        // Predicated region
        $region45: #{meta_dense_forward.1} parent=11 // pred_check
          %p346 = pneg %p249
        $region46: #{meta_dense_forward.1} parent=11 // pred_check_branch
          %348 = sbr.rel (%p346) target = $region48
        $region47: #{meta_dense_forward.1} parent=11 // pred_region
          _
        $region48: #{meta_dense_forward.1} parent=11 // pred_fallthru
          _
        // Predicated region
        $region49: #{meta_dense_forward.1} parent=11 // pred_check
          %p349 = pneg %p270
        $region50: #{meta_dense_forward.1} parent=11 // pred_check_branch
          %351 = sbr.rel (%p349) target = $region52
        $region51: #{meta_dense_forward.1} parent=11 // pred_region
          _
        $region52: #{meta_dense_forward.1} parent=11 // pred_fallthru
          _
      $region12: #{meta_dense_forward.1} parent=5 // pred_fallthru
        _
      %p352 = scmp.lt.s32.totalorder %s18, 16
      // Predicated region
      $region53: #{meta_dense_forward.1} parent=5 // pred_check
        %p353 = pneg %p352
      $region54: #{meta_dense_forward.1} parent=5 // pred_check_branch
        %355 = sbr.rel (%p353) target = $region56
      $region55: #{meta_dense_forward.1} parent=5 // pred_region
        // Predicated region
        $region57: #{meta_dense_forward.1} parent=55 // pred_check
          %p356 = pneg %p75
        $region58: #{meta_dense_forward.1} parent=55 // pred_check_branch
          %358 = sbr.rel (%p356) target = $region60
        $region59: #{meta_dense_forward.1} parent=55 // pred_region
          %p359 = scmp.eq.s32.totalorder %s25, 0
          %s360 = scalar_select %p359, %s26, 0
          %s361 = smul.u32 8, %s360
          %p362 = scmp.lt.s32.totalorder %s361, 31
          %s363 = scalar_select %p362, %s361, 31
          %s364 = smul.addr %s363, 8
          %s365 = scalar_lea.vmem %s1, %s364
          %p366 = scmp.eq.s32.totalorder %s25, 0
          %s367 = scalar_select %p366, %s26, 0
          %s368 = smul.u32 8, %s367
        $region60: #{meta_dense_forward.1} parent=55 // pred_fallthru
          _
      $region56: #{meta_dense_forward.1} parent=5 // pred_fallthru
        _
      %p369 = scmp.le.s32.totalorder 1, %s18
      %p370 = scmp.lt.s32.totalorder %s18, 17
      %p371 = pnand %p369, %p370
      %p372 = pneg %p371
      // Predicated region
      $region61: #{meta_dense_forward.1} parent=5 // pred_check
        _
      $region62: #{meta_dense_forward.1} parent=5 // pred_check_branch
        %374 = sbr.rel (%p371) target = $region64
      $region63: #{meta_dense_forward.1} parent=5 // pred_region
        %s375 = ssub.s32 %s18, 1
        // Predicated region
        $region65: #{meta_dense_forward.1} parent=63 // pred_check
          %p376 = pneg %p51
        $region66: #{meta_dense_forward.1} parent=63 // pred_check_branch
          %378 = sbr.rel (%p376) target = $region68
        $region67: #{meta_dense_forward.1} parent=63 // pred_region
          %380 = dma.done [#allocation9], 16
        $region68: #{meta_dense_forward.1} parent=63 // pred_fallthru
          _
        %381 = sfence
        %p382 = pneg %p51
        %p383 = pneg %p48
        %p384 = scmp.eq.s32.totalorder %s27, 0
        %s385 = scalar_select %p384, %s28, 0
        %s386 = smul.u32 8, %s385
        %p387 = scmp.lt.s32.totalorder %s386, 31
        %s388 = scalar_select %p387, %s386, 31
        %s389 = smul.addr %s388, 8
        %s390 = scalar_lea.vmem %s1, %s389
        %p391 = pneg %p81
        %p392 = pneg %p78
        %p393 = pneg %p102
        %p394 = pneg %p99
        %p395 = pneg %p123
        %p396 = pneg %p120
        %p397 = pneg %p144
        %p398 = pneg %p141
        %p399 = pneg %p165
        %p400 = pneg %p162
        %p401 = pneg %p186
        %p402 = pneg %p183
        %p403 = pneg %p207
        %p404 = pneg %p204
        %p405 = pneg %p228
        %p406 = pneg %p225
        %p407 = pneg %p249
        %p408 = pneg %p246
        %p409 = pneg %p270
        %p410 = pneg %p267
        %p411 = pneg %p300
        %p412 = pneg %p297
        %p413 = scmp.eq.s32.totalorder %s27, 3
        %s414 = scalar_select %p413, %s28, 0
        %s415 = smul.u32 8, %s414
        %p416 = scmp.lt.s32.totalorder %s415, 31
        %s417 = scalar_select %p416, %s415, 31
        %s418 = smul.addr %s417, 8
        %s419 = scalar_lea.vmem %s11, %s418
        %p420 = scmp.eq.s32.totalorder %s27, 0
        %s421 = scalar_select %p420, %s28, 0
        %s422 = smul.u32 8, %s421
        %p423 = scmp.lt.s32.totalorder %s422, 31
        %s424 = scalar_select %p423, %s422, 31
        %s425 = smul.addr %s424, 8
        %s426 = scalar_lea.vmem %s1, %s425
        %p427 = scmp.eq.s32.totalorder %s27, 0
        %s428 = scalar_select %p427, %s28, 0
        %s429 = smul.u32 8, %s428
        %p430 = scmp.eq.s32.totalorder %s27, 3
        %s431 = scalar_select %p430, %s28, 0
        %s432 = smul.u32 8, %s431
        %p433 = scmp.lt.s32.totalorder %s432, 31
        %s434 = scalar_select %p433, %s432, 31
        %s435 = smul.addr %s434, 8
        %s436 = scalar_lea.vmem %s11, %s435
        %p437 = scmp.eq.s32.totalorder %s27, 3
        %s438 = scalar_select %p437, %s28, 0
        %s439 = smul.u32 8, %s438
        %p441 = scmp.eq.s32.totalorder %s27, 0
        // Predicated region
        $region69: #{meta_dense_forward.1} parent=63 // pred_check
          %p442 = pneg %p441
        $region70: #{meta_dense_forward.1} parent=63 // pred_check_branch
          %444 = sbr.rel (%p442) target = $region72
        $region71: #{meta_dense_forward.1} parent=63 // pred_region
          %p445 = scmp.eq.s32.totalorder %s28, 0
          // Predicated region
          $region73: #{meta_dense_forward.1} parent=71 // pred_check
            %p446 = pneg %p445
          $region74: #{meta_dense_forward.1} parent=71 // pred_check_branch
            %448 = sbr.rel (%p446) target = $region76
          $region75: #{meta_dense_forward.1} parent=71 // pred_region
            %vm449 = vcmask 254976
            %450 = vst.msk [vmem:[#allocation5] sm:$0x3] %vm449, 0.0
          $region76: #{meta_dense_forward.1} parent=71 // pred_fallthru
            _
          %v451 = vld [vmem:[%s426] sm:$0xff]
          %v452 = vld [vmem:[%s426 + $0x8] sm:$0xff]
          %v453 = vld [vmem:[%s426 + $0x10] sm:$0xff]
          %v454 = vld [vmem:[%s426 + $0x18] sm:$0xff]
          %v455 = vld [vmem:[%s426 + $0x20] sm:$0xff]
          %v456 = vld [vmem:[%s426 + $0x28] sm:$0xff]
          %v457 = vld [vmem:[%s426 + $0x30] sm:$0xff]
          %v458 = vld [vmem:[%s426 + $0x38] sm:$0xff]
          %v459 = vld [vmem:[#allocation5] sm:$0x1]
          %vm460 = vcmask 261120
          %v461 = vsel %vm460, %v451, 0.0
          %v462 = vsel %vm460, %v452, 0.0
          %v463 = vadd.f32 %v461, %v462
          %v464 = vsel %vm460, %v453, 0.0
          %v465 = vadd.f32 %v463, %v464
          %v466 = vsel %vm460, %v454, 0.0
          %v467 = vadd.f32 %v465, %v466
          %v468 = vsel %vm460, %v455, 0.0
          %v469 = vadd.f32 %v467, %v468
          %v470 = vsel %vm460, %v456, 0.0
          %v471 = vadd.f32 %v469, %v470
          %v472 = vsel %vm460, %v457, 0.0
          %v473 = vadd.f32 %v471, %v472
          %v474 = vsel %vm460, %v458, 0.0
          %v475 = vadd.f32 %v473, %v474
          %v476 = vrot.slane %v475, 4
          %v477 = vadd.f32 %v475, %v476
          %v478 = vrot.slane %v477, 2
          %v479 = vadd.f32 %v477, %v478
          %v480 = vrot.slane %v479, 1
          %v481 = vadd.f32 %v479, %v480
          %v482 = vadd.f32 %v459, %v481
          %vm483 = vcmask 253952
          %484 = vst.msk [vmem:[#allocation5] sm:$0x1] %vm483, %v482
          %v485 = vld [vmem:[#allocation5 + $0x1] sm:$0x1]
          %v486 = vmul.f32 %v451, %v451
          %v487 = vmul.f32 %v452, %v452
          %v488 = vmul.f32 %v453, %v453
          %v489 = vmul.f32 %v454, %v454
          %v490 = vmul.f32 %v455, %v455
          %v491 = vmul.f32 %v456, %v456
          %v492 = vmul.f32 %v457, %v457
          %v493 = vmul.f32 %v458, %v458
          %v494 = vsel %vm460, %v486, 0.0
          %v495 = vsel %vm460, %v487, 0.0
          %v496 = vadd.f32 %v494, %v495
          %v497 = vsel %vm460, %v488, 0.0
          %v498 = vadd.f32 %v496, %v497
          %v499 = vsel %vm460, %v489, 0.0
          %v500 = vadd.f32 %v498, %v499
          %v501 = vsel %vm460, %v490, 0.0
          %v502 = vadd.f32 %v500, %v501
          %v503 = vsel %vm460, %v491, 0.0
          %v504 = vadd.f32 %v502, %v503
          %v505 = vsel %vm460, %v492, 0.0
          %v506 = vadd.f32 %v504, %v505
          %v507 = vsel %vm460, %v493, 0.0
          %v508 = vadd.f32 %v506, %v507
          %v509 = vrot.slane %v508, 4
          %v510 = vadd.f32 %v508, %v509
          %v511 = vrot.slane %v510, 2
          %v512 = vadd.f32 %v510, %v511
          %v513 = vrot.slane %v512, 1
          %v514 = vadd.f32 %v512, %v513
          %v515 = vadd.f32 %v485, %v514
          %516 = vst.msk [vmem:[#allocation5 + $0x1] sm:$0x1] %vm483, %v515
          %v517 = vpack.c.bf16 %v451, %v451
          %v518 = vpack.c.bf16 %v452, %v452
          %v519 = vpack.c.bf16 %v453, %v453
          %v520 = vpack.c.bf16 %v454, %v454
          %v521 = vpack.c.bf16 %v455, %v455
          %v522 = vpack.c.bf16 %v456, %v456
          %v523 = vpack.c.bf16 %v457, %v457
          %v524 = vpack.c.bf16 %v458, %v458
          %s525 = smul.u32 %s28, 8
          %s526 = smul.addr %s525, 4
          %s527 = scalar_lea.vmem [#allocation2], %s526
          %vm528 = vcmask 257024
          %529 = vst.msk [vmem:[%s527] sm:$0xf] %vm528, %v517
          %530 = vst.msk [vmem:[%s527 + $0x4] sm:$0xf] %vm528, %v518
          %531 = vst.msk [vmem:[%s527 + $0x8] sm:$0xf] %vm528, %v519
          %532 = vst.msk [vmem:[%s527 + $0xc] sm:$0xf] %vm528, %v520
          %533 = vst.msk [vmem:[%s527 + $0x10] sm:$0xf] %vm528, %v521
          %534 = vst.msk [vmem:[%s527 + $0x14] sm:$0xf] %vm528, %v522
          %535 = vst.msk [vmem:[%s527 + $0x18] sm:$0xf] %vm528, %v523
          %536 = vst.msk [vmem:[%s527 + $0x1c] sm:$0xf] %vm528, %v524
        $region72: #{meta_dense_forward.1} parent=63 // pred_fallthru
          _
        %p537 = scmp.eq.s32.totalorder %s27, 1
        // Predicated region
        $region77: #{meta_dense_forward.1} parent=63 // pred_check
          %p538 = pneg %p537
        $region78: #{meta_dense_forward.1} parent=63 // pred_check_branch
          %540 = sbr.rel (%p538) target = $region80
        $region79: #{meta_dense_forward.1} parent=63 // pred_region
          %p541 = scmp.eq.s32.totalorder %s28, 0
          // Predicated region
          $region81: #{meta_dense_forward.1} parent=79 // pred_check
            %p542 = pneg %p541
          $region82: #{meta_dense_forward.1} parent=79 // pred_check_branch
            %544 = sbr.rel (%p542) target = $region84
          $region83: #{meta_dense_forward.1} parent=79 // pred_region
            %v545 = vld [vmem:[#allocation5] sm:$0x1]
            %v546 = vmul.f32 %v545, 0.00390625
            %v547 = vld [vmem:[#allocation5 + $0x1] sm:$0x1]
            %v548 = vmul.f32 %v547, 0.00390625
            %v549 = vmul.f32 %v546, %v546
            %v550 = vsub.f32 %v548, %v549
            %v551 = vmax.f32 %v550, 0.0
            %v552 = vadd.f32 %v551, 1e-05
            %v553 = vrsqrt.pop %v552
            %v554 = vmul.f32 %v553, %v552
            %v555 = vmul.f32 %v554, %v553
            %v556 = vmul.f32 0.5, %v555
            %v557 = vsub.f32 1.5, %v556
            %v558 = vmul.f32 %v553, %v557
            %vm559 = vweird.f32 %v552
            %vm560 = vweird.f32 %v553
            %vm561 = vmor %vm559, %vm560
            %v562 = vsel %vm561, %v553, %v558
            %v563 = vld [vmem:[%s2] sm:$0x1]
            %v564 = vmul.f32 %v563, %v562
            %v565 = vld [vmem:[%s2 + $0x1] sm:$0x1]
            %v566 = vmul.f32 %v546, %v564
            %v567 = vsub.f32 %v565, %v566
            %vm568 = vcmask 253952
            %569 = vst.msk [vmem:[#allocation5] sm:$0x1] %vm568, %v564
            %570 = vst.msk [vmem:[#allocation5 + $0x1] sm:$0x1] %vm568, %v567
            %vm571 = vcmask 517120
            %572 = vst.msk [vmem:[#allocation6] sm:$0x3] %vm571, 0.0
          $region84: #{meta_dense_forward.1} parent=79 // pred_fallthru
            _
          %s573 = smul.u32 %s28, 8
          %s574 = smul.addr %s573, 4
          %s575 = scalar_lea.vmem [#allocation2], %s574
          %v576 = vld [vmem:[%s575] sm:$0xf]
          %v577 = vld [vmem:[%s575 + $0x4] sm:$0xf]
          %v578 = vld [vmem:[%s575 + $0x8] sm:$0xf]
          %v579 = vld [vmem:[%s575 + $0xc] sm:$0xf]
          %v580 = vld [vmem:[%s575 + $0x10] sm:$0xf]
          %v581 = vld [vmem:[%s575 + $0x14] sm:$0xf]
          %v582 = vld [vmem:[%s575 + $0x18] sm:$0xf]
          %v583 = vld [vmem:[%s575 + $0x1c] sm:$0xf]
          %v584 = vunpack.c.l.bf16 %v576
          %v585 = vunpack.c.l.bf16 %v577
          %v586 = vunpack.c.l.bf16 %v578
          %v587 = vunpack.c.l.bf16 %v579
          %v588 = vunpack.c.l.bf16 %v580
          %v589 = vunpack.c.l.bf16 %v581
          %v590 = vunpack.c.l.bf16 %v582
          %v591 = vunpack.c.l.bf16 %v583
          %v592 = vld [vmem:[#allocation5] sm:$0x1]
          %v593 = vperm.slane %v592, 0
          %v594 = vmul.f32 %v584, %v593
          %v595 = vmul.f32 %v585, %v593
          %v596 = vmul.f32 %v586, %v593
          %v597 = vmul.f32 %v587, %v593
          %v598 = vmul.f32 %v588, %v593
          %v599 = vmul.f32 %v589, %v593
          %v600 = vmul.f32 %v590, %v593
          %v601 = vmul.f32 %v591, %v593
          %v602 = vld [vmem:[#allocation5 + $0x1] sm:$0x1]
          %v603 = vperm.slane %v602, 0
          %v604 = vadd.f32 %v594, %v603
          %v605 = vadd.f32 %v595, %v603
          %v606 = vadd.f32 %v596, %v603
          %v607 = vadd.f32 %v597, %v603
          %v608 = vadd.f32 %v598, %v603
          %v609 = vadd.f32 %v599, %v603
          %v610 = vadd.f32 %v600, %v603
          %v611 = vadd.f32 %v601, %v603
          %v612 = vpack.c.bf16 %v605, %v604
          %v613 = vpack.c.bf16 %v607, %v606
          %v614 = vpack.c.bf16 %v609, %v608
          %v615 = vpack.c.bf16 %v611, %v610
          %v616 = vld [vmem:[%s3] sm:$0xf]
          %v617 = vld [vmem:[%s3 + $0x4] sm:$0xf]
          %v618 = vld [vmem:[%s3 + $0x8] sm:$0xf]
          %v619 = vld [vmem:[%s3 + $0xc] sm:$0xf]
          %v620 = vld [vmem:[%s4] sm:$0x1]
          %v622 = vperm.slane %v620, 0
          %v628 = vunpack.c.l.b16 %v616
          %v629 = vunpack.c.l.b16 %v617
          %v630 = vunpack.c.l.b16 %v618
          %v631 = vunpack.c.l.b16 %v619
          %v632 = vpack.c.b16 %v629, %v628
          %v633 = vpack.c.b16 %v631, %v630
          %vm636 = vcmask 261120
          %v638 = vsel %vm636, %v612, 0
          %v641 = vsel %vm636, %v613, 0
          %v644 = vsel %vm636, %v614, 0
          %v647 = vsel %vm636, %v615, 0
          %649 = vmatpush.bf16.msra.mxu0 0
          %650 = vmatpush.bf16.msra.mxu0 0
          %651 = vmatpush.bf16.msra.mxu0 0
          %652 = vmatpush.bf16.msra.mxu0 0
          %653 = vmatpush.bf16.msra.mxu0 0
          %654 = vmatpush.bf16.msra.mxu0 0
          %655 = vmatpush.bf16.msra.mxu0 %v633
          %656 = vmatpush.bf16.msra.mxu0 %v632
          %657 = vmatmul.bf16.gmra.mxu0 %v638
          %v658 = vpop.f32.mrf.mxu0
          %v659 = vadd.f32 %v622, %v658
          %v660 = vpop.f32.mrf.mxu0
          %v661 = vadd.f32 %v622, %v660
          %662 = vmatmul.bf16.gmra.mxu0 %v641
          %v663 = vpop.f32.mrf.mxu0
          %v664 = vadd.f32 %v622, %v663
          %v665 = vpop.f32.mrf.mxu0
          %v666 = vadd.f32 %v622, %v665
          %667 = vmatmul.bf16.gmra.mxu0 %v644
          %v668 = vpop.f32.mrf.mxu0
          %v669 = vadd.f32 %v622, %v668
          %v670 = vpop.f32.mrf.mxu0
          %v671 = vadd.f32 %v622, %v670
          %672 = vmatmul.bf16.gmra.mxu0 %v647
          %v673 = vpop.f32.mrf.mxu0
          %v674 = vadd.f32 %v622, %v673
          %v675 = vpop.f32.mrf.mxu0
          %v676 = vadd.f32 %v622, %v675
          %677 = vdwg.mxu0
          %vm678 = vcmp.ge.f32.partialorder %v659, 0.0
          %vm679 = vcmp.ge.f32.partialorder %v661, 0.0
          %vm680 = vcmp.ge.f32.partialorder %v664, 0.0
          %vm681 = vcmp.ge.f32.partialorder %v666, 0.0
          %vm682 = vcmp.ge.f32.partialorder %v669, 0.0
          %vm683 = vcmp.ge.f32.partialorder %v671, 0.0
          %vm684 = vcmp.ge.f32.partialorder %v674, 0.0
          %vm685 = vcmp.ge.f32.partialorder %v676, 0.0
          %s686 = sld [smem:[#allocation8]]
          %v687 = vstv %s686
          %v688 = vmul.f32 %v687, %v659
          %v689 = vmul.f32 %v687, %v661
          %v690 = vmul.f32 %v687, %v664
          %v691 = vmul.f32 %v687, %v666
          %v692 = vmul.f32 %v687, %v669
          %v693 = vmul.f32 %v687, %v671
          %v694 = vmul.f32 %v687, %v674
          %v695 = vmul.f32 %v687, %v676
          %v696 = vsel %vm678, %v659, %v688
          %v697 = vsel %vm679, %v661, %v689
          %v698 = vsel %vm680, %v664, %v690
          %v699 = vsel %vm681, %v666, %v691
          %v700 = vsel %vm682, %v669, %v692
          %v701 = vsel %vm683, %v671, %v693
          %v702 = vsel %vm684, %v674, %v694
          %v703 = vsel %vm685, %v676, %v695
          %v704 = vld [vmem:[#allocation6] sm:$0x1]
          %vm705 = vcmask 523264
          %v706 = vsel %vm705, %v696, 0.0
          %v707 = vsel %vm705, %v697, 0.0
          %v708 = vadd.f32 %v706, %v707
          %v709 = vsel %vm705, %v698, 0.0
          %v710 = vadd.f32 %v708, %v709
          %v711 = vsel %vm705, %v699, 0.0
          %v712 = vadd.f32 %v710, %v711
          %v713 = vsel %vm705, %v700, 0.0
          %v714 = vadd.f32 %v712, %v713
          %v715 = vsel %vm705, %v701, 0.0
          %v716 = vadd.f32 %v714, %v715
          %v717 = vsel %vm705, %v702, 0.0
          %v718 = vadd.f32 %v716, %v717
          %v719 = vsel %vm705, %v703, 0.0
          %v720 = vadd.f32 %v718, %v719
          %v721 = vrot.slane %v720, 4
          %v722 = vadd.f32 %v720, %v721
          %v723 = vrot.slane %v722, 2
          %v724 = vadd.f32 %v722, %v723
          %v725 = vrot.slane %v724, 1
          %v726 = vadd.f32 %v724, %v725
          %v727 = vadd.f32 %v704, %v726
          %vm728 = vcmask 516096
          %729 = vst.msk [vmem:[#allocation6] sm:$0x1] %vm728, %v727
          %v730 = vld [vmem:[#allocation6 + $0x1] sm:$0x1]
          %v731 = vmul.f32 %v696, %v696
          %v732 = vmul.f32 %v697, %v697
          %v733 = vmul.f32 %v698, %v698
          %v734 = vmul.f32 %v699, %v699
          %v735 = vmul.f32 %v700, %v700
          %v736 = vmul.f32 %v701, %v701
          %v737 = vmul.f32 %v702, %v702
          %v738 = vmul.f32 %v703, %v703
          %v739 = vsel %vm705, %v731, 0.0
          %v740 = vsel %vm705, %v732, 0.0
          %v741 = vadd.f32 %v739, %v740
          %v742 = vsel %vm705, %v733, 0.0
          %v743 = vadd.f32 %v741, %v742
          %v744 = vsel %vm705, %v734, 0.0
          %v745 = vadd.f32 %v743, %v744
          %v746 = vsel %vm705, %v735, 0.0
          %v747 = vadd.f32 %v745, %v746
          %v748 = vsel %vm705, %v736, 0.0
          %v749 = vadd.f32 %v747, %v748
          %v750 = vsel %vm705, %v737, 0.0
          %v751 = vadd.f32 %v749, %v750
          %v752 = vsel %vm705, %v738, 0.0
          %v753 = vadd.f32 %v751, %v752
          %v754 = vrot.slane %v753, 4
          %v755 = vadd.f32 %v753, %v754
          %v756 = vrot.slane %v755, 2
          %v757 = vadd.f32 %v755, %v756
          %v758 = vrot.slane %v757, 1
          %v759 = vadd.f32 %v757, %v758
          %v760 = vadd.f32 %v730, %v759
          %761 = vst.msk [vmem:[#allocation6 + $0x1] sm:$0x1] %vm728, %v760
          %v762 = vpack.c.bf16 %v696, %v696
          %v763 = vpack.c.bf16 %v697, %v697
          %v764 = vpack.c.bf16 %v698, %v698
          %v765 = vpack.c.bf16 %v699, %v699
          %v766 = vpack.c.bf16 %v700, %v700
          %v767 = vpack.c.bf16 %v701, %v701
          %v768 = vpack.c.bf16 %v702, %v702
          %v769 = vpack.c.bf16 %v703, %v703
          %s770 = smul.addr %s573, 4
          %s771 = scalar_lea.vmem [#allocation3], %s770
          %vm772 = vcmask 519168
          %773 = vst.msk [vmem:[%s771] sm:$0xf] %vm772, %v762
          %774 = vst.msk [vmem:[%s771 + $0x4] sm:$0xf] %vm772, %v763
          %775 = vst.msk [vmem:[%s771 + $0x8] sm:$0xf] %vm772, %v764
          %776 = vst.msk [vmem:[%s771 + $0xc] sm:$0xf] %vm772, %v765
          %777 = vst.msk [vmem:[%s771 + $0x10] sm:$0xf] %vm772, %v766
          %778 = vst.msk [vmem:[%s771 + $0x14] sm:$0xf] %vm772, %v767
          %779 = vst.msk [vmem:[%s771 + $0x18] sm:$0xf] %vm772, %v768
          %780 = vst.msk [vmem:[%s771 + $0x1c] sm:$0xf] %vm772, %v769
        $region80: #{meta_dense_forward.1} parent=63 // pred_fallthru
          _
        %p781 = scmp.eq.s32.totalorder %s27, 2
        // Predicated region
        $region85: #{meta_dense_forward.1} parent=63 // pred_check
          %p782 = pneg %p781
        $region86: #{meta_dense_forward.1} parent=63 // pred_check_branch
          %784 = sbr.rel (%p782) target = $region88
        $region87: #{meta_dense_forward.1} parent=63 // pred_region
          %p785 = scmp.eq.s32.totalorder %s28, 0
          // Predicated region
          $region89: #{meta_dense_forward.1} parent=87 // pred_check
            %p786 = pneg %p785
          $region90: #{meta_dense_forward.1} parent=87 // pred_check_branch
            %788 = sbr.rel (%p786) target = $region92
          $region91: #{meta_dense_forward.1} parent=87 // pred_region
            %v789 = vld [vmem:[#allocation6] sm:$0x1]
            %v790 = vmul.f32 %v789, 0.00390625
            %v791 = vld [vmem:[#allocation6 + $0x1] sm:$0x1]
            %v792 = vmul.f32 %v791, 0.00390625
            %v793 = vmul.f32 %v790, %v790
            %v794 = vsub.f32 %v792, %v793
            %v795 = vmax.f32 %v794, 0.0
            %v796 = vadd.f32 %v795, 1e-05
            %v797 = vrsqrt.pop %v796
            %v798 = vmul.f32 %v797, %v796
            %v799 = vmul.f32 %v798, %v797
            %v800 = vmul.f32 0.5, %v799
            %v801 = vsub.f32 1.5, %v800
            %v802 = vmul.f32 %v797, %v801
            %vm803 = vweird.f32 %v796
            %vm804 = vweird.f32 %v797
            %vm805 = vmor %vm803, %vm804
            %v806 = vsel %vm805, %v797, %v802
            %v807 = vld [vmem:[%s5] sm:$0x1]
            %v808 = vmul.f32 %v807, %v806
            %v809 = vld [vmem:[%s5 + $0x1] sm:$0x1]
            %v810 = vmul.f32 %v790, %v808
            %v811 = vsub.f32 %v809, %v810
            %vm812 = vcmask 516096
            %813 = vst.msk [vmem:[#allocation6] sm:$0x1] %vm812, %v808
            %814 = vst.msk [vmem:[#allocation6 + $0x1] sm:$0x1] %vm812, %v811
            %vm815 = vcmask 254976
            %816 = vst.msk [vmem:[#allocation7] sm:$0x3] %vm815, 0.0
          $region92: #{meta_dense_forward.1} parent=87 // pred_fallthru
            _
          %s817 = smul.u32 %s28, 8
          %s818 = smul.addr %s817, 4
          %s819 = scalar_lea.vmem [#allocation3], %s818
          %v820 = vld [vmem:[%s819] sm:$0xf]
          %v821 = vld [vmem:[%s819 + $0x4] sm:$0xf]
          %v822 = vld [vmem:[%s819 + $0x8] sm:$0xf]
          %v823 = vld [vmem:[%s819 + $0xc] sm:$0xf]
          %v824 = vld [vmem:[%s819 + $0x10] sm:$0xf]
          %v825 = vld [vmem:[%s819 + $0x14] sm:$0xf]
          %v826 = vld [vmem:[%s819 + $0x18] sm:$0xf]
          %v827 = vld [vmem:[%s819 + $0x1c] sm:$0xf]
          %v828 = vunpack.c.l.bf16 %v820
          %v829 = vunpack.c.l.bf16 %v821
          %v830 = vunpack.c.l.bf16 %v822
          %v831 = vunpack.c.l.bf16 %v823
          %v832 = vunpack.c.l.bf16 %v824
          %v833 = vunpack.c.l.bf16 %v825
          %v834 = vunpack.c.l.bf16 %v826
          %v835 = vunpack.c.l.bf16 %v827
          %v836 = vld [vmem:[#allocation6] sm:$0x1]
          %v837 = vperm.slane %v836, 0
          %v838 = vmul.f32 %v828, %v837
          %v839 = vmul.f32 %v829, %v837
          %v840 = vmul.f32 %v830, %v837
          %v841 = vmul.f32 %v831, %v837
          %v842 = vmul.f32 %v832, %v837
          %v843 = vmul.f32 %v833, %v837
          %v844 = vmul.f32 %v834, %v837
          %v845 = vmul.f32 %v835, %v837
          %v846 = vld [vmem:[#allocation6 + $0x1] sm:$0x1]
          %v847 = vperm.slane %v846, 0
          %v848 = vadd.f32 %v838, %v847
          %v849 = vadd.f32 %v839, %v847
          %v850 = vadd.f32 %v840, %v847
          %v851 = vadd.f32 %v841, %v847
          %v852 = vadd.f32 %v842, %v847
          %v853 = vadd.f32 %v843, %v847
          %v854 = vadd.f32 %v844, %v847
          %v855 = vadd.f32 %v845, %v847
          %v856 = vpack.c.bf16 %v849, %v848
          %v857 = vpack.c.bf16 %v851, %v850
          %v858 = vpack.c.bf16 %v853, %v852
          %v859 = vpack.c.bf16 %v855, %v854
          %v860 = vld [vmem:[%s6] sm:$0xf]
          %v861 = vld [vmem:[%s6 + $0x4] sm:$0xf]
          %v862 = vld [vmem:[%s6 + $0x8] sm:$0xf]
          %v863 = vld [vmem:[%s6 + $0xc] sm:$0xf]
          %v864 = vld [vmem:[%s6 + $0x10] sm:$0xf]
          %v865 = vld [vmem:[%s6 + $0x14] sm:$0xf]
          %v866 = vld [vmem:[%s6 + $0x18] sm:$0xf]
          %v867 = vld [vmem:[%s6 + $0x1c] sm:$0xf]
          %v868 = vld [vmem:[%s7] sm:$0x1]
          %v870 = vperm.slane %v868, 0
          %v880 = vunpack.c.l.b16 %v860
          %v881 = vunpack.c.l.b16 %v861
          %v882 = vunpack.c.l.b16 %v862
          %v883 = vunpack.c.l.b16 %v863
          %v884 = vunpack.c.l.b16 %v864
          %v885 = vunpack.c.l.b16 %v865
          %v886 = vunpack.c.l.b16 %v866
          %v887 = vunpack.c.l.b16 %v867
          %v888 = vpack.c.b16 %v881, %v880
          %v889 = vpack.c.b16 %v883, %v882
          %v890 = vpack.c.b16 %v885, %v884
          %v891 = vpack.c.b16 %v887, %v886
          %vm896 = vcmask 523264
          %v898 = vsel %vm896, %v856, 0
          %v901 = vsel %vm896, %v857, 0
          %v904 = vsel %vm896, %v858, 0
          %v907 = vsel %vm896, %v859, 0
          %909 = vmatpush.bf16.msra.mxu0 0
          %910 = vmatpush.bf16.msra.mxu0 0
          %911 = vmatpush.bf16.msra.mxu0 0
          %912 = vmatpush.bf16.msra.mxu0 0
          %913 = vmatpush.bf16.msra.mxu0 %v891
          %914 = vmatpush.bf16.msra.mxu0 %v890
          %915 = vmatpush.bf16.msra.mxu0 %v889
          %916 = vmatpush.bf16.msra.mxu0 %v888
          %917 = vmatmul.bf16.gmra.mxu0 %v898
          %v918 = vpop.f32.mrf.mxu0
          %v919 = vadd.f32 %v870, %v918
          %v920 = vpop.f32.mrf.mxu0
          %v921 = vadd.f32 %v870, %v920
          %922 = vmatmul.bf16.gmra.mxu0 %v901
          %v923 = vpop.f32.mrf.mxu0
          %v924 = vadd.f32 %v870, %v923
          %v925 = vpop.f32.mrf.mxu0
          %v926 = vadd.f32 %v870, %v925
          %927 = vmatmul.bf16.gmra.mxu0 %v904
          %v928 = vpop.f32.mrf.mxu0
          %v929 = vadd.f32 %v870, %v928
          %v930 = vpop.f32.mrf.mxu0
          %v931 = vadd.f32 %v870, %v930
          %932 = vmatmul.bf16.gmra.mxu0 %v907
          %v933 = vpop.f32.mrf.mxu0
          %v934 = vadd.f32 %v870, %v933
          %v935 = vpop.f32.mrf.mxu0
          %v936 = vadd.f32 %v870, %v935
          %937 = vdwg.mxu0
          %vm938 = vcmp.ge.f32.partialorder %v919, 0.0
          %vm939 = vcmp.ge.f32.partialorder %v921, 0.0
          %vm940 = vcmp.ge.f32.partialorder %v924, 0.0
          %vm941 = vcmp.ge.f32.partialorder %v926, 0.0
          %vm942 = vcmp.ge.f32.partialorder %v929, 0.0
          %vm943 = vcmp.ge.f32.partialorder %v931, 0.0
          %vm944 = vcmp.ge.f32.partialorder %v934, 0.0
          %vm945 = vcmp.ge.f32.partialorder %v936, 0.0
          %s946 = sld [smem:[#allocation8 + $0x1]]
          %v947 = vstv %s946
          %v948 = vmul.f32 %v947, %v919
          %v949 = vmul.f32 %v947, %v921
          %v950 = vmul.f32 %v947, %v924
          %v951 = vmul.f32 %v947, %v926
          %v952 = vmul.f32 %v947, %v929
          %v953 = vmul.f32 %v947, %v931
          %v954 = vmul.f32 %v947, %v934
          %v955 = vmul.f32 %v947, %v936
          %v956 = vsel %vm938, %v919, %v948
          %v957 = vsel %vm939, %v921, %v949
          %v958 = vsel %vm940, %v924, %v950
          %v959 = vsel %vm941, %v926, %v951
          %v960 = vsel %vm942, %v929, %v952
          %v961 = vsel %vm943, %v931, %v953
          %v962 = vsel %vm944, %v934, %v954
          %v963 = vsel %vm945, %v936, %v955
          %v964 = vld [vmem:[#allocation7] sm:$0x1]
          %vm965 = vcmask 261120
          %v966 = vsel %vm965, %v956, 0.0
          %v967 = vsel %vm965, %v957, 0.0
          %v968 = vadd.f32 %v966, %v967
          %v969 = vsel %vm965, %v958, 0.0
          %v970 = vadd.f32 %v968, %v969
          %v971 = vsel %vm965, %v959, 0.0
          %v972 = vadd.f32 %v970, %v971
          %v973 = vsel %vm965, %v960, 0.0
          %v974 = vadd.f32 %v972, %v973
          %v975 = vsel %vm965, %v961, 0.0
          %v976 = vadd.f32 %v974, %v975
          %v977 = vsel %vm965, %v962, 0.0
          %v978 = vadd.f32 %v976, %v977
          %v979 = vsel %vm965, %v963, 0.0
          %v980 = vadd.f32 %v978, %v979
          %v981 = vrot.slane %v980, 4
          %v982 = vadd.f32 %v980, %v981
          %v983 = vrot.slane %v982, 2
          %v984 = vadd.f32 %v982, %v983
          %v985 = vrot.slane %v984, 1
          %v986 = vadd.f32 %v984, %v985
          %v987 = vadd.f32 %v964, %v986
          %vm988 = vcmask 253952
          %989 = vst.msk [vmem:[#allocation7] sm:$0x1] %vm988, %v987
          %v990 = vld [vmem:[#allocation7 + $0x1] sm:$0x1]
          %v991 = vmul.f32 %v956, %v956
          %v992 = vmul.f32 %v957, %v957
          %v993 = vmul.f32 %v958, %v958
          %v994 = vmul.f32 %v959, %v959
          %v995 = vmul.f32 %v960, %v960
          %v996 = vmul.f32 %v961, %v961
          %v997 = vmul.f32 %v962, %v962
          %v998 = vmul.f32 %v963, %v963
          %v999 = vsel %vm965, %v991, 0.0
          %v1000 = vsel %vm965, %v992, 0.0
          %v1001 = vadd.f32 %v999, %v1000
          %v1002 = vsel %vm965, %v993, 0.0
          %v1003 = vadd.f32 %v1001, %v1002
          %v1004 = vsel %vm965, %v994, 0.0
          %v1005 = vadd.f32 %v1003, %v1004
          %v1006 = vsel %vm965, %v995, 0.0
          %v1007 = vadd.f32 %v1005, %v1006
          %v1008 = vsel %vm965, %v996, 0.0
          %v1009 = vadd.f32 %v1007, %v1008
          %v1010 = vsel %vm965, %v997, 0.0
          %v1011 = vadd.f32 %v1009, %v1010
          %v1012 = vsel %vm965, %v998, 0.0
          %v1013 = vadd.f32 %v1011, %v1012
          %v1014 = vrot.slane %v1013, 4
          %v1015 = vadd.f32 %v1013, %v1014
          %v1016 = vrot.slane %v1015, 2
          %v1017 = vadd.f32 %v1015, %v1016
          %v1018 = vrot.slane %v1017, 1
          %v1019 = vadd.f32 %v1017, %v1018
          %v1020 = vadd.f32 %v990, %v1019
          %1021 = vst.msk [vmem:[#allocation7 + $0x1] sm:$0x1] %vm988, %v1020
          %v1022 = vpack.c.bf16 %v956, %v956
          %v1023 = vpack.c.bf16 %v957, %v957
          %v1024 = vpack.c.bf16 %v958, %v958
          %v1025 = vpack.c.bf16 %v959, %v959
          %v1026 = vpack.c.bf16 %v960, %v960
          %v1027 = vpack.c.bf16 %v961, %v961
          %v1028 = vpack.c.bf16 %v962, %v962
          %v1029 = vpack.c.bf16 %v963, %v963
          %s1030 = smul.addr %s817, 4
          %s1031 = scalar_lea.vmem [#allocation4], %s1030
          %vm1032 = vcmask 257024
          %1033 = vst.msk [vmem:[%s1031] sm:$0xf] %vm1032, %v1022
          %1034 = vst.msk [vmem:[%s1031 + $0x4] sm:$0xf] %vm1032, %v1023
          %1035 = vst.msk [vmem:[%s1031 + $0x8] sm:$0xf] %vm1032, %v1024
          %1036 = vst.msk [vmem:[%s1031 + $0xc] sm:$0xf] %vm1032, %v1025
          %1037 = vst.msk [vmem:[%s1031 + $0x10] sm:$0xf] %vm1032, %v1026
          %1038 = vst.msk [vmem:[%s1031 + $0x14] sm:$0xf] %vm1032, %v1027
          %1039 = vst.msk [vmem:[%s1031 + $0x18] sm:$0xf] %vm1032, %v1028
          %1040 = vst.msk [vmem:[%s1031 + $0x1c] sm:$0xf] %vm1032, %v1029
        $region88: #{meta_dense_forward.1} parent=63 // pred_fallthru
          _
        %p1041 = scmp.eq.s32.totalorder %s27, 3
        // Predicated region
        $region93: #{meta_dense_forward.1} parent=63 // pred_check
          %p1042 = pneg %p1041
        $region94: #{meta_dense_forward.1} parent=63 // pred_check_branch
          %1044 = sbr.rel (%p1042) target = $region96
        $region95: #{meta_dense_forward.1} parent=63 // pred_region
          %p1045 = scmp.eq.s32.totalorder %s28, 0
          // Predicated region
          $region97: #{meta_dense_forward.1} parent=95 // pred_check
            %p1046 = pneg %p1045
          $region98: #{meta_dense_forward.1} parent=95 // pred_check_branch
            %1048 = sbr.rel (%p1046) target = $region100
          $region99: #{meta_dense_forward.1} parent=95 // pred_region
            %v1049 = vld [vmem:[#allocation7] sm:$0x1]
            %v1050 = vmul.f32 %v1049, 0.00390625
            %v1051 = vld [vmem:[#allocation7 + $0x1] sm:$0x1]
            %v1052 = vmul.f32 %v1051, 0.00390625
            %v1053 = vmul.f32 %v1050, %v1050
            %v1054 = vsub.f32 %v1052, %v1053
            %v1055 = vmax.f32 %v1054, 0.0
            %v1056 = vadd.f32 %v1055, 1e-05
            %v1057 = vrsqrt.pop %v1056
            %v1058 = vmul.f32 %v1057, %v1056
            %v1059 = vmul.f32 %v1058, %v1057
            %v1060 = vmul.f32 0.5, %v1059
            %v1061 = vsub.f32 1.5, %v1060
            %v1062 = vmul.f32 %v1057, %v1061
            %vm1063 = vweird.f32 %v1056
            %vm1064 = vweird.f32 %v1057
            %vm1065 = vmor %vm1063, %vm1064
            %v1066 = vsel %vm1065, %v1057, %v1062
            %v1067 = vld [vmem:[%s8] sm:$0x1]
            %v1068 = vmul.f32 %v1067, %v1066
            %v1069 = vld [vmem:[%s8 + $0x1] sm:$0x1]
            %v1070 = vmul.f32 %v1050, %v1068
            %v1071 = vsub.f32 %v1069, %v1070
            %vm1072 = vcmask 253952
            %1073 = vst.msk [vmem:[#allocation7] sm:$0x1] %vm1072, %v1068
            %1074 = vst.msk [vmem:[#allocation7 + $0x1] sm:$0x1] %vm1072, %v1071
          $region100: #{meta_dense_forward.1} parent=95 // pred_fallthru
            _
          %s1075 = smul.u32 %s28, 8
          %s1076 = smul.addr %s1075, 4
          %s1077 = scalar_lea.vmem [#allocation4], %s1076
          %v1078 = vld [vmem:[%s1077] sm:$0xf]
          %v1079 = vld [vmem:[%s1077 + $0x4] sm:$0xf]
          %v1080 = vld [vmem:[%s1077 + $0x8] sm:$0xf]
          %v1081 = vld [vmem:[%s1077 + $0xc] sm:$0xf]
          %v1082 = vld [vmem:[%s1077 + $0x10] sm:$0xf]
          %v1083 = vld [vmem:[%s1077 + $0x14] sm:$0xf]
          %v1084 = vld [vmem:[%s1077 + $0x18] sm:$0xf]
          %v1085 = vld [vmem:[%s1077 + $0x1c] sm:$0xf]
          %v1086 = vunpack.c.l.bf16 %v1078
          %v1087 = vunpack.c.l.bf16 %v1079
          %v1088 = vunpack.c.l.bf16 %v1080
          %v1089 = vunpack.c.l.bf16 %v1081
          %v1090 = vunpack.c.l.bf16 %v1082
          %v1091 = vunpack.c.l.bf16 %v1083
          %v1092 = vunpack.c.l.bf16 %v1084
          %v1093 = vunpack.c.l.bf16 %v1085
          %v1094 = vld [vmem:[#allocation7] sm:$0x1]
          %v1095 = vperm.slane %v1094, 0
          %v1096 = vmul.f32 %v1086, %v1095
          %v1097 = vmul.f32 %v1087, %v1095
          %v1098 = vmul.f32 %v1088, %v1095
          %v1099 = vmul.f32 %v1089, %v1095
          %v1100 = vmul.f32 %v1090, %v1095
          %v1101 = vmul.f32 %v1091, %v1095
          %v1102 = vmul.f32 %v1092, %v1095
          %v1103 = vmul.f32 %v1093, %v1095
          %v1104 = vld [vmem:[#allocation7 + $0x1] sm:$0x1]
          %v1105 = vperm.slane %v1104, 0
          %v1106 = vadd.f32 %v1096, %v1105
          %v1107 = vadd.f32 %v1097, %v1105
          %v1108 = vadd.f32 %v1098, %v1105
          %v1109 = vadd.f32 %v1099, %v1105
          %v1110 = vadd.f32 %v1100, %v1105
          %v1111 = vadd.f32 %v1101, %v1105
          %v1112 = vadd.f32 %v1102, %v1105
          %v1113 = vadd.f32 %v1103, %v1105
          %v1114 = vpack.c.bf16 %v1107, %v1106
          %v1115 = vpack.c.bf16 %v1109, %v1108
          %v1116 = vpack.c.bf16 %v1111, %v1110
          %v1117 = vpack.c.bf16 %v1113, %v1112
          %v1118 = vld [vmem:[%s9] sm:$0xf]
          %v1119 = vld [vmem:[%s9 + $0x4] sm:$0xf]
          %v1120 = vld [vmem:[%s9 + $0x8] sm:$0xf]
          %v1121 = vld [vmem:[%s9 + $0xc] sm:$0xf]
          %v1122 = vld [vmem:[%s10] sm:$0x1]
          %v1124 = vperm.slane %v1122, 0
          %v1130 = vunpack.c.l.b16 %v1118
          %v1131 = vunpack.c.l.b16 %v1119
          %v1132 = vunpack.c.l.b16 %v1120
          %v1133 = vunpack.c.l.b16 %v1121
          %v1134 = vpack.c.b16 %v1131, %v1130
          %v1135 = vpack.c.b16 %v1133, %v1132
          %vm1138 = vcmask 261120
          %v1140 = vsel %vm1138, %v1114, 0
          %v1143 = vsel %vm1138, %v1115, 0
          %v1146 = vsel %vm1138, %v1116, 0
          %v1149 = vsel %vm1138, %v1117, 0
          %1151 = vmatpush.bf16.msra.mxu0 0
          %1152 = vmatpush.bf16.msra.mxu0 0
          %1153 = vmatpush.bf16.msra.mxu0 0
          %1154 = vmatpush.bf16.msra.mxu0 0
          %1155 = vmatpush.bf16.msra.mxu0 0
          %1156 = vmatpush.bf16.msra.mxu0 0
          %1157 = vmatpush.bf16.msra.mxu0 %v1135
          %1158 = vmatpush.bf16.msra.mxu0 %v1134
          %1159 = vmatmul.bf16.gmra.mxu0 %v1140
          %v1160 = vpop.f32.mrf.mxu0
          %v1161 = vadd.f32 %v1124, %v1160
          %v1162 = vpop.f32.mrf.mxu0
          %v1163 = vadd.f32 %v1124, %v1162
          %1164 = vmatmul.bf16.gmra.mxu0 %v1143
          %v1165 = vpop.f32.mrf.mxu0
          %v1166 = vadd.f32 %v1124, %v1165
          %v1167 = vpop.f32.mrf.mxu0
          %v1168 = vadd.f32 %v1124, %v1167
          %1169 = vmatmul.bf16.gmra.mxu0 %v1146
          %v1170 = vpop.f32.mrf.mxu0
          %v1171 = vadd.f32 %v1124, %v1170
          %v1172 = vpop.f32.mrf.mxu0
          %v1173 = vadd.f32 %v1124, %v1172
          %1174 = vmatmul.bf16.gmra.mxu0 %v1149
          %v1175 = vpop.f32.mrf.mxu0
          %v1176 = vadd.f32 %v1124, %v1175
          %v1177 = vpop.f32.mrf.mxu0
          %v1178 = vadd.f32 %v1124, %v1177
          %1179 = vdwg.mxu0
          %v1180 = vtanh.pop %v1161
          %v1181 = vtanh.pop %v1163
          %v1182 = vtanh.pop %v1166
          %v1183 = vtanh.pop %v1168
          %v1184 = vtanh.pop %v1171
          %v1185 = vtanh.pop %v1173
          %v1186 = vtanh.pop %v1176
          %v1187 = vtanh.pop %v1178
          %vm1188 = vcmask 130048
          %1189 = vst.msk [vmem:[%s436] sm:$0xff] %vm1188, %v1180
          %1190 = vst.msk [vmem:[%s436 + $0x8] sm:$0xff] %vm1188, %v1181
          %1191 = vst.msk [vmem:[%s436 + $0x10] sm:$0xff] %vm1188, %v1182
          %1192 = vst.msk [vmem:[%s436 + $0x18] sm:$0xff] %vm1188, %v1183
          %1193 = vst.msk [vmem:[%s436 + $0x20] sm:$0xff] %vm1188, %v1184
          %1194 = vst.msk [vmem:[%s436 + $0x28] sm:$0xff] %vm1188, %v1185
          %1195 = vst.msk [vmem:[%s436 + $0x30] sm:$0xff] %vm1188, %v1186
          %1196 = vst.msk [vmem:[%s436 + $0x38] sm:$0xff] %vm1188, %v1187
        $region96: #{meta_dense_forward.1} parent=63 // pred_fallthru
          _
        %p1197 = scmp.eq.s32.totalorder %s27, 3
        %s1198 = scalar_select %p1197, %s28, 0
        %s1199 = smul.u32 8, %s1198
        %p1200 = scmp.lt.s32.totalorder %s1199, 31
        %s1201 = scalar_select %p1200, %s1199, 31
        %s1202 = smul.addr %s1201, 8
        %s1203 = scalar_lea.vmem %s11, %s1202
        // Predicated region
        $region101: #{meta_dense_forward.1} parent=63 // pred_check
          %p1204 = pneg %p297
        $region102: #{meta_dense_forward.1} parent=63 // pred_check_branch
          %1206 = sbr.rel (%p1204) target = $region104
        $region103: #{meta_dense_forward.1} parent=63 // pred_region
          %p1207 = scmp.eq.s32.totalorder %s27, 3
          %s1208 = scalar_select %p1207, %s28, 0
          %s1209 = smul.u32 8, %s1208
        $region104: #{meta_dense_forward.1} parent=63 // pred_fallthru
          _
      $region64: #{meta_dense_forward.1} parent=5 // pred_fallthru
        _
      %p1210 = scmp.le.s32.totalorder 2, %s18
      // Predicated region
      $region105: #{meta_dense_forward.1} parent=5 // pred_check
        %p1211 = pneg %p1210
      $region106: #{meta_dense_forward.1} parent=5 // pred_check_branch
        %1213 = sbr.rel (%p1211) target = $region108
      $region107: #{meta_dense_forward.1} parent=5 // pred_region
        %s1214 = ssub.s32 %s18, 2
        // Predicated region
        $region109: #{meta_dense_forward.1} parent=107 // pred_check
          %p1215 = pneg %p303
        $region110: #{meta_dense_forward.1} parent=107 // pred_check_branch
          %1217 = sbr.rel (%p1215) target = $region112
        $region111: #{meta_dense_forward.1} parent=107 // pred_region
          %p1218 = scmp.eq.s32.totalorder %s29, 3
          %s1219 = scalar_select %p1218, %s30, 0
          %s1220 = smul.u32 8, %s1219
          %p1221 = scmp.lt.s32.totalorder %s1220, 31
          %s1222 = scalar_select %p1221, %s1220, 31
          %s1223 = smul.addr %s1222, 8
          %s1224 = scalar_lea.vmem %s11, %s1223
        $region112: #{meta_dense_forward.1} parent=107 // pred_fallthru
          _
      $region108: #{meta_dense_forward.1} parent=5 // pred_fallthru
        _
    $region6: #{meta_dense_forward.1} parent=1 // loop_footer
      %s22 = sadd.s32 1, %s18
    $region7: #{meta_dense_forward.1} parent=1 // loop_footer_branch
      %17 = sbr.rel target = $region3
    $region8: #{meta_dense_forward.1} parent=1 // loop_exit
      _
    %1225 = vsyncpa [#allocation9], 1
    %s1226 = scalar_lea.sflag [#allocation9], 1
    %1227 = vsyncpa %s1226, 1

</llo_original>
